<compile_context>
chip_gen: v7x
topology: tpu7x:2x2x1
jax: 0.10.0
libtpu: 0.0.40
codegen_flags: <defaults>
</compile_context>

<pallas_src>
import functools

import jax
import jax.numpy as jnp
from jax.experimental import pallas as pl
from jax.experimental.pallas import tpu as pltpu


# ----------------------------------------------------------------------------
# Fused encoder kernel: stacked RGCN layers + gated graph aggregation.
# One batch element (graph) per grid step.
# ----------------------------------------------------------------------------
def _fused_encoder_kernel(a_ref, h0_ref, *refs, num_layers, num_relations):
    """refs = [w_0, b_0, ..., w_{L-1}, b_{L-1},
               wi_top, wi_bot, bi, wj_top, wj_bot, bj, o_ref]"""
    layer_refs = refs[: 2 * num_layers]
    wi_t, wi_b, bi, wj_t, wj_b, bj = refs[2 * num_layers: 2 * num_layers + 6]
    o_ref = refs[2 * num_layers + 6]

    a = a_ref[0]           # [N, (R+1)*N] relation-flattened adjacency (+ identity)
    h0 = h0_ref[0]         # [N, F_in]
    h = h0

    for layer in range(num_layers):
        w = layer_refs[2 * layer]        # [R+1, F_in_l, F_out_l] (index R = self)
        b = layer_refs[2 * layer + 1]    # [1, F_out_l]
        # (R+1) small feature matmuls, stacked along rows so the relation sum
        # becomes ONE contraction with K = (R+1)*N on the MXU.
        hw_stack = jnp.concatenate(
            [jnp.dot(h, w[r], preferred_element_type=jnp.float32)
             for r in range(num_relations + 1)],
            axis=0)                                               # [(R+1)*N, F_out]
        acc = jnp.dot(a, hw_stack, preferred_element_type=jnp.float32)
        h = jnp.tanh(acc + b[...])                                # [N, F_out]

    # Gated graph aggregation on [h, h0] (concat replaced by split weights).
    gate = jax.nn.sigmoid(
        jnp.dot(h, wi_t[...], preferred_element_type=jnp.float32)
        + jnp.dot(h0, wi_b[...], preferred_element_type=jnp.float32)
        + bi[...])
    feat = jnp.tanh(
        jnp.dot(h, wj_t[...], preferred_element_type=jnp.float32)
        + jnp.dot(h0, wj_b[...], preferred_element_type=jnp.float32)
        + bj[...])
    o_ref[0] = jnp.tanh(jnp.sum(gate * feat, axis=0, keepdims=True))   # [1, aux]


# ----------------------------------------------------------------------------
# Wrapper: wrapper-side layout plumbing + one fused pallas_call.
# ----------------------------------------------------------------------------
def encoder_rgcn_forward(adj, nodes, params):
    """adj: [B, R, N, N], nodes: [B, N, F_in] -> [B, aux]."""
    B, R, N, _ = adj.shape
    F_in = nodes.shape[-1]

    # Free layout plumbing outside the kernel: fold relation into the
    # contraction axis and append the identity block for the self-loop weight.
    a_flat = jnp.transpose(adj, (0, 2, 1, 3)).reshape(B, N, R * N)
    eye = jnp.broadcast_to(jnp.eye(N, dtype=adj.dtype), (B, N, N))
    a_aug = jnp.concatenate([a_flat, eye], axis=-1)               # [B, N, (R+1)*N]

    operands = [a_aug, nodes]
    in_specs = [
        pl.BlockSpec((1, N, (R + 1) * N), lambda i: (i, 0, 0)),
        pl.BlockSpec((1, N, F_in), lambda i: (i, 0, 0)),
    ]
    for (w, b) in params["gcn_layers"]:
        operands += [w, b]
        in_specs += [
            pl.BlockSpec(w.shape, lambda i: (0, 0, 0)),   # weights resident in VMEM
            pl.BlockSpec(b.shape, lambda i: (0, 0)),
        ]

    wi, bi, wj, bj = params["agg"]
    f_last = params["gcn_layers"][-1][0].shape[-1]
    wi_t, wi_b = wi[:f_last], wi[f_last:]
    wj_t, wj_b = wj[:f_last], wj[f_last:]
    agg_operands = [wi_t, wi_b, bi, wj_t, wj_b, bj]
    operands += agg_operands
    in_specs += [pl.BlockSpec(x.shape, lambda i: (0, 0)) for x in agg_operands]

    aux = wi.shape[-1]
    kernel = functools.partial(
        _fused_encoder_kernel,
        num_layers=len(params["gcn_layers"]),
        num_relations=R)

    out = pl.pallas_call(
        kernel,
        out_shape=jax.ShapeDtypeStruct((B, 1, aux), jnp.float32),
        grid=(B,),
        in_specs=in_specs,
        out_specs=pl.BlockSpec((1, 1, aux), lambda i: (i, 0, 0)),
        compiler_params=pltpu.CompilerParams(
            dimension_semantics=("parallel",)),
    )(*operands)
    return out.reshape(B, aux)


# ----------------------------------------------------------------------------
# Pure-JAX reference for sanity checking the fused kernel.
# ----------------------------------------------------------------------------
def _reference_forward(adj, nodes, params):
    h = nodes
    R = adj.shape[1]
    for (w, b) in params["gcn_layers"]:
        acc = jnp.einsum("bnf,fo->bno", h, w[R])
        for r in range(R):
            acc = acc + jnp.einsum("bnm,bmf,fo->bno", adj[:, r], h, w[r])
        h = jnp.tanh(acc + b[0])
    h_cat = jnp.concatenate([h, nodes], axis=-1)
    wi, bi, wj, bj = params["agg"]
    gate = jax.nn.sigmoid(jnp.einsum("bnf,fo->bno", h_cat, wi) + bi[0])
    feat = jnp.tanh(jnp.einsum("bnf,fo->bno", h_cat, wj) + bj[0])
    return jnp.tanh(jnp.sum(gate * feat, axis=1))


def init_params(key, f_in, graph_convolution_units, auxiliary_units, num_relations):
    params = {"gcn_layers": []}
    f = f_in
    for u in graph_convolution_units:
        key, kw, kb = jax.random.split(key, 3)
        w = jax.random.normal(kw, (num_relations + 1, f, u), jnp.float32) * 0.1
        b = jax.random.normal(kb, (1, u), jnp.float32) * 0.1
        params["gcn_layers"].append((w, b))
        f = u
    f_agg = f + f_in  # concat of last hidden with original node features
    key, k1, k2, k3, k4 = jax.random.split(key, 5)
    wi = jax.random.normal(k1, (f_agg, auxiliary_units), jnp.float32) * 0.1
    bi = jax.random.normal(k2, (1, auxiliary_units), jnp.float32) * 0.1
    wj = jax.random.normal(k3, (f_agg, auxiliary_units), jnp.float32) * 0.1
    bj = jax.random.normal(k4, (1, auxiliary_units), jnp.float32) * 0.1
    params["agg"] = (wi, bi, wj, bj)
    return params


if __name__ == "__main__":
    B, R, N, F_IN = 2, 4, 16, 8
    GRAPH_CONV_UNITS = [32, 16]     # graph_convolution_units
    AUX_UNITS = 32                  # auxiliary_units

    key = jax.random.PRNGKey(0)
    key, ka, kn = jax.random.split(key, 3)
    adj = (jax.random.uniform(ka, (B, R, N, N)) > 0.7).astype(jnp.float32)
    nodes = jax.random.normal(kn, (B, N, F_IN), jnp.float32)

    params = init_params(key, F_IN, GRAPH_CONV_UNITS, AUX_UNITS, R)

    out = encoder_rgcn_forward(adj, nodes, params)
    out = jax.block_until_ready(out)

    ref = _reference_forward(adj, nodes, params)
    assert out.shape == (B, AUX_UNITS)
    assert jnp.allclose(out, ref, atol=2e-4, rtol=2e-4), "mismatch vs JAX reference"

    print("KERNEL_OK")
</pallas_src>

<mosaic_0001>
module attributes {stable_mosaic.version = 11 : i64} {
  func.func @_fused_encoder_kernel(%arg0: i32, %arg1: memref<1x16x80xf32, #tpu.memory_space<vmem>>, %arg2: memref<1x16x8xf32, #tpu.memory_space<vmem>>, %arg3: memref<5x8x32xf32, #tpu.memory_space<vmem>>, %arg4: memref<1x32xf32, #tpu.memory_space<vmem>>, %arg5: memref<5x32x16xf32, #tpu.memory_space<vmem>>, %arg6: memref<1x16xf32, #tpu.memory_space<vmem>>, %arg7: memref<16x32xf32, #tpu.memory_space<vmem>>, %arg8: memref<8x32xf32, #tpu.memory_space<vmem>>, %arg9: memref<1x32xf32, #tpu.memory_space<vmem>>, %arg10: memref<16x32xf32, #tpu.memory_space<vmem>>, %arg11: memref<8x32xf32, #tpu.memory_space<vmem>>, %arg12: memref<1x32xf32, #tpu.memory_space<vmem>>, %arg13: memref<1x1x32xf32, #tpu.memory_space<vmem>>) attributes {dimension_semantics = [#tpu.dimension_semantics<parallel>], iteration_bounds = array<i64: 2>, scalar_prefetch = 0 : i64, scratch_operands = 0 : i64, tpu.core_type = #tpu.core_type<tc>, window_params = [{transform_indices = @transform_0, window_bounds = array<i64: 1, 16, 80>}, {transform_indices = @transform_1, window_bounds = array<i64: 1, 16, 8>}, {pipeline_mode = #tpu.pipeline_mode<synchronous>, transform_indices = @transform_2, window_bounds = array<i64: 5, 8, 32>}, {pipeline_mode = #tpu.pipeline_mode<synchronous>, transform_indices = @transform_3, window_bounds = array<i64: 1, 32>}, {pipeline_mode = #tpu.pipeline_mode<synchronous>, transform_indices = @transform_4, window_bounds = array<i64: 5, 32, 16>}, {pipeline_mode = #tpu.pipeline_mode<synchronous>, transform_indices = @transform_5, window_bounds = array<i64: 1, 16>}, {pipeline_mode = #tpu.pipeline_mode<synchronous>, transform_indices = @transform_6, window_bounds = array<i64: 16, 32>}, {pipeline_mode = #tpu.pipeline_mode<synchronous>, transform_indices = @transform_7, window_bounds = array<i64: 8, 32>}, {pipeline_mode = #tpu.pipeline_mode<synchronous>, transform_indices = @transform_8, window_bounds = array<i64: 1, 32>}, {pipeline_mode = #tpu.pipeline_mode<synchronous>, transform_indices = @transform_9, window_bounds = array<i64: 16, 32>}, {pipeline_mode = #tpu.pipeline_mode<synchronous>, transform_indices = @transform_10, window_bounds = array<i64: 8, 32>}, {pipeline_mode = #tpu.pipeline_mode<synchronous>, transform_indices = @transform_11, window_bounds = array<i64: 1, 32>}, {transform_indices = @transform_12, window_bounds = array<i64: 1, 1, 32>}]} {
    %c0 = arith.constant 0 : index
    %c0_0 = arith.constant 0 : index
    %c0_1 = arith.constant 0 : index
    %0 = vector.load %arg1[%c0, %c0_0, %c0_1] : memref<1x16x80xf32, #tpu.memory_space<vmem>>, vector<1x16x80xf32>
    %1 = vector.shape_cast %0 : vector<1x16x80xf32> to vector<16x80xf32>
    %c0_2 = arith.constant 0 : index
    %c0_3 = arith.constant 0 : index
    %c0_4 = arith.constant 0 : index
    %2 = vector.load %arg2[%c0_2, %c0_3, %c0_4] : memref<1x16x8xf32, #tpu.memory_space<vmem>>, vector<1x16x8xf32>
    %3 = vector.shape_cast %2 : vector<1x16x8xf32> to vector<16x8xf32>
    %c0_5 = arith.constant 0 : index
    %c0_6 = arith.constant 0 : index
    %c0_7 = arith.constant 0 : index
    %4 = vector.load %arg3[%c0_5, %c0_6, %c0_7] : memref<5x8x32xf32, #tpu.memory_space<vmem>>, vector<1x8x32xf32>
    %5 = vector.shape_cast %4 : vector<1x8x32xf32> to vector<8x32xf32>
    %cst = arith.constant dense<0.000000e+00> : vector<16x32xf32>
    %6 = tpu.matmul %3, %5, %cst {dimension_numbers = #tpu.dot_dimension_numbers<[1], [0], [0], [1], [0, 0, 1, 1], [], []>} : vector<16x8xf32>, vector<8x32xf32>, vector<16x32xf32> -> vector<16x32xf32>
    %c1 = arith.constant 1 : index
    %c0_8 = arith.constant 0 : index
    %c0_9 = arith.constant 0 : index
    %7 = vector.load %arg3[%c1, %c0_8, %c0_9] : memref<5x8x32xf32, #tpu.memory_space<vmem>>, vector<1x8x32xf32>
    %8 = vector.shape_cast %7 : vector<1x8x32xf32> to vector<8x32xf32>
    %cst_10 = arith.constant dense<0.000000e+00> : vector<16x32xf32>
    %9 = tpu.matmul %3, %8, %cst_10 {dimension_numbers = #tpu.dot_dimension_numbers<[1], [0], [0], [1], [0, 0, 1, 1], [], []>} : vector<16x8xf32>, vector<8x32xf32>, vector<16x32xf32> -> vector<16x32xf32>
    %c2 = arith.constant 2 : index
    %c0_11 = arith.constant 0 : index
    %c0_12 = arith.constant 0 : index
    %10 = vector.load %arg3[%c2, %c0_11, %c0_12] : memref<5x8x32xf32, #tpu.memory_space<vmem>>, vector<1x8x32xf32>
    %11 = vector.shape_cast %10 : vector<1x8x32xf32> to vector<8x32xf32>
    %cst_13 = arith.constant dense<0.000000e+00> : vector<16x32xf32>
    %12 = tpu.matmul %3, %11, %cst_13 {dimension_numbers = #tpu.dot_dimension_numbers<[1], [0], [0], [1], [0, 0, 1, 1], [], []>} : vector<16x8xf32>, vector<8x32xf32>, vector<16x32xf32> -> vector<16x32xf32>
    %c3 = arith.constant 3 : index
    %c0_14 = arith.constant 0 : index
    %c0_15 = arith.constant 0 : index
    %13 = vector.load %arg3[%c3, %c0_14, %c0_15] : memref<5x8x32xf32, #tpu.memory_space<vmem>>, vector<1x8x32xf32>
    %14 = vector.shape_cast %13 : vector<1x8x32xf32> to vector<8x32xf32>
    %cst_16 = arith.constant dense<0.000000e+00> : vector<16x32xf32>
    %15 = tpu.matmul %3, %14, %cst_16 {dimension_numbers = #tpu.dot_dimension_numbers<[1], [0], [0], [1], [0, 0, 1, 1], [], []>} : vector<16x8xf32>, vector<8x32xf32>, vector<16x32xf32> -> vector<16x32xf32>
    %c4 = arith.constant 4 : index
    %c0_17 = arith.constant 0 : index
    %c0_18 = arith.constant 0 : index
    %16 = vector.load %arg3[%c4, %c0_17, %c0_18] : memref<5x8x32xf32, #tpu.memory_space<vmem>>, vector<1x8x32xf32>
    %17 = vector.shape_cast %16 : vector<1x8x32xf32> to vector<8x32xf32>
    %cst_19 = arith.constant dense<0.000000e+00> : vector<16x32xf32>
    %18 = tpu.matmul %3, %17, %cst_19 {dimension_numbers = #tpu.dot_dimension_numbers<[1], [0], [0], [1], [0, 0, 1, 1], [], []>} : vector<16x8xf32>, vector<8x32xf32>, vector<16x32xf32> -> vector<16x32xf32>
    %19 = tpu.concatenate %6, %9, %12, %15, %18 in 0 : vector<16x32xf32>, vector<16x32xf32>, vector<16x32xf32>, vector<16x32xf32>, vector<16x32xf32> -> vector<80x32xf32>
    %cst_20 = arith.constant dense<0.000000e+00> : vector<16x32xf32>
    %20 = tpu.matmul %1, %19, %cst_20 {dimension_numbers = #tpu.dot_dimension_numbers<[1], [0], [0], [1], [0, 0, 1, 1], [], []>} : vector<16x80xf32>, vector<80x32xf32>, vector<16x32xf32> -> vector<16x32xf32>
    %c0_21 = arith.constant 0 : index
    %c0_22 = arith.constant 0 : index
    %21 = vector.load %arg4[%c0_21, %c0_22] : memref<1x32xf32, #tpu.memory_space<vmem>>, vector<1x32xf32>
    %22 = vector.broadcast %21 : vector<1x32xf32> to vector<16x32xf32>
    %23 = arith.addf %20, %22 : vector<16x32xf32>
    %24 = math.tanh %23 : vector<16x32xf32>
    %c0_23 = arith.constant 0 : index
    %c0_24 = arith.constant 0 : index
    %c0_25 = arith.constant 0 : index
    %25 = vector.load %arg5[%c0_23, %c0_24, %c0_25] : memref<5x32x16xf32, #tpu.memory_space<vmem>>, vector<1x32x16xf32>
    %26 = vector.shape_cast %25 : vector<1x32x16xf32> to vector<32x16xf32>
    %cst_26 = arith.constant dense<0.000000e+00> : vector<16x16xf32>
    %27 = tpu.matmul %24, %26, %cst_26 {dimension_numbers = #tpu.dot_dimension_numbers<[1], [0], [0], [1], [0, 0, 1, 1], [], []>} : vector<16x32xf32>, vector<32x16xf32>, vector<16x16xf32> -> vector<16x16xf32>
    %c1_27 = arith.constant 1 : index
    %c0_28 = arith.constant 0 : index
    %c0_29 = arith.constant 0 : index
    %28 = vector.load %arg5[%c1_27, %c0_28, %c0_29] : memref<5x32x16xf32, #tpu.memory_space<vmem>>, vector<1x32x16xf32>
    %29 = vector.shape_cast %28 : vector<1x32x16xf32> to vector<32x16xf32>
    %cst_30 = arith.constant dense<0.000000e+00> : vector<16x16xf32>
    %30 = tpu.matmul %24, %29, %cst_30 {dimension_numbers = #tpu.dot_dimension_numbers<[1], [0], [0], [1], [0, 0, 1, 1], [], []>} : vector<16x32xf32>, vector<32x16xf32>, vector<16x16xf32> -> vector<16x16xf32>
    %c2_31 = arith.constant 2 : index
    %c0_32 = arith.constant 0 : index
    %c0_33 = arith.constant 0 : index
    %31 = vector.load %arg5[%c2_31, %c0_32, %c0_33] : memref<5x32x16xf32, #tpu.memory_space<vmem>>, vector<1x32x16xf32>
    %32 = vector.shape_cast %31 : vector<1x32x16xf32> to vector<32x16xf32>
    %cst_34 = arith.constant dense<0.000000e+00> : vector<16x16xf32>
    %33 = tpu.matmul %24, %32, %cst_34 {dimension_numbers = #tpu.dot_dimension_numbers<[1], [0], [0], [1], [0, 0, 1, 1], [], []>} : vector<16x32xf32>, vector<32x16xf32>, vector<16x16xf32> -> vector<16x16xf32>
    %c3_35 = arith.constant 3 : index
    %c0_36 = arith.constant 0 : index
    %c0_37 = arith.constant 0 : index
    %34 = vector.load %arg5[%c3_35, %c0_36, %c0_37] : memref<5x32x16xf32, #tpu.memory_space<vmem>>, vector<1x32x16xf32>
    %35 = vector.shape_cast %34 : vector<1x32x16xf32> to vector<32x16xf32>
    %cst_38 = arith.constant dense<0.000000e+00> : vector<16x16xf32>
    %36 = tpu.matmul %24, %35, %cst_38 {dimension_numbers = #tpu.dot_dimension_numbers<[1], [0], [0], [1], [0, 0, 1, 1], [], []>} : vector<16x32xf32>, vector<32x16xf32>, vector<16x16xf32> -> vector<16x16xf32>
    %c4_39 = arith.constant 4 : index
    %c0_40 = arith.constant 0 : index
    %c0_41 = arith.constant 0 : index
    %37 = vector.load %arg5[%c4_39, %c0_40, %c0_41] : memref<5x32x16xf32, #tpu.memory_space<vmem>>, vector<1x32x16xf32>
    %38 = vector.shape_cast %37 : vector<1x32x16xf32> to vector<32x16xf32>
    %cst_42 = arith.constant dense<0.000000e+00> : vector<16x16xf32>
    %39 = tpu.matmul %24, %38, %cst_42 {dimension_numbers = #tpu.dot_dimension_numbers<[1], [0], [0], [1], [0, 0, 1, 1], [], []>} : vector<16x32xf32>, vector<32x16xf32>, vector<16x16xf32> -> vector<16x16xf32>
    %40 = tpu.concatenate %27, %30, %33, %36, %39 in 0 : vector<16x16xf32>, vector<16x16xf32>, vector<16x16xf32>, vector<16x16xf32>, vector<16x16xf32> -> vector<80x16xf32>
    %cst_43 = arith.constant dense<0.000000e+00> : vector<16x16xf32>
    %41 = tpu.matmul %1, %40, %cst_43 {dimension_numbers = #tpu.dot_dimension_numbers<[1], [0], [0], [1], [0, 0, 1, 1], [], []>} : vector<16x80xf32>, vector<80x16xf32>, vector<16x16xf32> -> vector<16x16xf32>
    %c0_44 = arith.constant 0 : index
    %c0_45 = arith.constant 0 : index
    %42 = vector.load %arg6[%c0_44, %c0_45] : memref<1x16xf32, #tpu.memory_space<vmem>>, vector<1x16xf32>
    %43 = vector.broadcast %42 : vector<1x16xf32> to vector<16x16xf32>
    %44 = arith.addf %41, %43 : vector<16x16xf32>
    %45 = math.tanh %44 : vector<16x16xf32>
    %c0_46 = arith.constant 0 : index
    %c0_47 = arith.constant 0 : index
    %46 = vector.load %arg7[%c0_46, %c0_47] : memref<16x32xf32, #tpu.memory_space<vmem>>, vector<16x32xf32>
    %cst_48 = arith.constant dense<0.000000e+00> : vector<16x32xf32>
    %47 = tpu.matmul %45, %46, %cst_48 {dimension_numbers = #tpu.dot_dimension_numbers<[1], [0], [0], [1], [0, 0, 1, 1], [], []>} : vector<16x16xf32>, vector<16x32xf32>, vector<16x32xf32> -> vector<16x32xf32>
    %c0_49 = arith.constant 0 : index
    %c0_50 = arith.constant 0 : index
    %48 = vector.load %arg8[%c0_49, %c0_50] : memref<8x32xf32, #tpu.memory_space<vmem>>, vector<8x32xf32>
    %cst_51 = arith.constant dense<0.000000e+00> : vector<16x32xf32>
    %49 = tpu.matmul %3, %48, %cst_51 {dimension_numbers = #tpu.dot_dimension_numbers<[1], [0], [0], [1], [0, 0, 1, 1], [], []>} : vector<16x8xf32>, vector<8x32xf32>, vector<16x32xf32> -> vector<16x32xf32>
    %50 = arith.addf %47, %49 : vector<16x32xf32>
    %c0_52 = arith.constant 0 : index
    %c0_53 = arith.constant 0 : index
    %51 = vector.load %arg9[%c0_52, %c0_53] : memref<1x32xf32, #tpu.memory_space<vmem>>, vector<1x32xf32>
    %52 = vector.broadcast %51 : vector<1x32xf32> to vector<16x32xf32>
    %53 = arith.addf %50, %52 : vector<16x32xf32>
    %54 = arith.negf %53 : vector<16x32xf32>
    %55 = math.exp %54 : vector<16x32xf32>
    %cst_54 = arith.constant 1.000000e+00 : f32
    %56 = vector.broadcast %cst_54 : f32 to vector<16x32xf32>
    %57 = arith.addf %56, %55 : vector<16x32xf32>
    %58 = arith.divf %56, %57 : vector<16x32xf32>
    %c0_55 = arith.constant 0 : index
    %c0_56 = arith.constant 0 : index
    %59 = vector.load %arg10[%c0_55, %c0_56] : memref<16x32xf32, #tpu.memory_space<vmem>>, vector<16x32xf32>
    %cst_57 = arith.constant dense<0.000000e+00> : vector<16x32xf32>
    %60 = tpu.matmul %45, %59, %cst_57 {dimension_numbers = #tpu.dot_dimension_numbers<[1], [0], [0], [1], [0, 0, 1, 1], [], []>} : vector<16x16xf32>, vector<16x32xf32>, vector<16x32xf32> -> vector<16x32xf32>
    %c0_58 = arith.constant 0 : index
    %c0_59 = arith.constant 0 : index
    %61 = vector.load %arg11[%c0_58, %c0_59] : memref<8x32xf32, #tpu.memory_space<vmem>>, vector<8x32xf32>
    %cst_60 = arith.constant dense<0.000000e+00> : vector<16x32xf32>
    %62 = tpu.matmul %3, %61, %cst_60 {dimension_numbers = #tpu.dot_dimension_numbers<[1], [0], [0], [1], [0, 0, 1, 1], [], []>} : vector<16x8xf32>, vector<8x32xf32>, vector<16x32xf32> -> vector<16x32xf32>
    %63 = arith.addf %60, %62 : vector<16x32xf32>
    %c0_61 = arith.constant 0 : index
    %c0_62 = arith.constant 0 : index
    %64 = vector.load %arg12[%c0_61, %c0_62] : memref<1x32xf32, #tpu.memory_space<vmem>>, vector<1x32xf32>
    %65 = vector.broadcast %64 : vector<1x32xf32> to vector<16x32xf32>
    %66 = arith.addf %63, %65 : vector<16x32xf32>
    %67 = math.tanh %66 : vector<16x32xf32>
    %68 = arith.mulf %58, %67 : vector<16x32xf32>
    %cst_63 = arith.constant dense<0.000000e+00> : vector<32xf32>
    %69 = vector.multi_reduction <add>, %68, %cst_63 [0] : vector<16x32xf32> to vector<32xf32>
    %70 = vector.shape_cast %69 : vector<32xf32> to vector<1x32xf32>
    %71 = math.tanh %70 : vector<1x32xf32>
    %c0_64 = arith.constant 0 : index
    %c0_65 = arith.constant 0 : index
    %c0_66 = arith.constant 0 : index
    %72 = vector.load %arg13[%c0_64, %c0_65, %c0_66] : memref<1x1x32xf32, #tpu.memory_space<vmem>>, vector<1x1x32xf32>
    %73 = vector.shape_cast %72 : vector<1x1x32xf32> to vector<1x32xf32>
    %74 = vector.shape_cast %71 : vector<1x32xf32> to vector<1x1x32xf32>
    tpu.vector_store %arg13[%c0_64, %c0_65, %c0_66], %74 {strides = array<i32>} : memref<1x1x32xf32, #tpu.memory_space<vmem>>, vector<1x1x32xf32>,
    return
  }
  func.func @transform_0(%arg0: i32) -> (i32, i32, i32) {
    %c0_i32 = arith.constant 0 : i32
    %c0_i32_0 = arith.constant 0 : i32
    %c0_i32_1 = arith.constant 0 : i32
    return %arg0, %c0_i32, %c0_i32_0 : i32, i32, i32
  }
  func.func @transform_1(%arg0: i32) -> (i32, i32, i32) {
    %c0_i32 = arith.constant 0 : i32
    %c0_i32_0 = arith.constant 0 : i32
    %c0_i32_1 = arith.constant 0 : i32
    return %arg0, %c0_i32, %c0_i32_0 : i32, i32, i32
  }
  func.func @transform_2(%arg0: i32) -> (i32, i32, i32) {
    %c0_i32 = arith.constant 0 : i32
    %c0_i32_0 = arith.constant 0 : i32
    %c0_i32_1 = arith.constant 0 : i32
    %c0_i32_2 = arith.constant 0 : i32
    return %c0_i32, %c0_i32_0, %c0_i32_1 : i32, i32, i32
  }
  func.func @transform_3(%arg0: i32) -> (i32, i32) {
    %c0_i32 = arith.constant 0 : i32
    %c0_i32_0 = arith.constant 0 : i32
    %c0_i32_1 = arith.constant 0 : i32
    return %c0_i32, %c0_i32_0 : i32, i32
  }
  func.func @transform_4(%arg0: i32) -> (i32, i32, i32) {
    %c0_i32 = arith.constant 0 : i32
    %c0_i32_0 = arith.constant 0 : i32
    %c0_i32_1 = arith.constant 0 : i32
    %c0_i32_2 = arith.constant 0 : i32
    return %c0_i32, %c0_i32_0, %c0_i32_1 : i32, i32, i32
  }
  func.func @transform_5(%arg0: i32) -> (i32, i32) {
    %c0_i32 = arith.constant 0 : i32
    %c0_i32_0 = arith.constant 0 : i32
    %c0_i32_1 = arith.constant 0 : i32
    return %c0_i32, %c0_i32_0 : i32, i32
  }
  func.func @transform_6(%arg0: i32) -> (i32, i32) {
    %c0_i32 = arith.constant 0 : i32
    %c0_i32_0 = arith.constant 0 : i32
    %c0_i32_1 = arith.constant 0 : i32
    return %c0_i32, %c0_i32_0 : i32, i32
  }
  func.func @transform_7(%arg0: i32) -> (i32, i32) {
    %c0_i32 = arith.constant 0 : i32
    %c0_i32_0 = arith.constant 0 : i32
    %c0_i32_1 = arith.constant 0 : i32
    return %c0_i32, %c0_i32_0 : i32, i32
  }
  func.func @transform_8(%arg0: i32) -> (i32, i32) {
    %c0_i32 = arith.constant 0 : i32
    %c0_i32_0 = arith.constant 0 : i32
    %c0_i32_1 = arith.constant 0 : i32
    return %c0_i32, %c0_i32_0 : i32, i32
  }
  func.func @transform_9(%arg0: i32) -> (i32, i32) {
    %c0_i32 = arith.constant 0 : i32
    %c0_i32_0 = arith.constant 0 : i32
    %c0_i32_1 = arith.constant 0 : i32
    return %c0_i32, %c0_i32_0 : i32, i32
  }
  func.func @transform_10(%arg0: i32) -> (i32, i32) {
    %c0_i32 = arith.constant 0 : i32
    %c0_i32_0 = arith.constant 0 : i32
    %c0_i32_1 = arith.constant 0 : i32
    return %c0_i32, %c0_i32_0 : i32, i32
  }
  func.func @transform_11(%arg0: i32) -> (i32, i32) {
    %c0_i32 = arith.constant 0 : i32
    %c0_i32_0 = arith.constant 0 : i32
    %c0_i32_1 = arith.constant 0 : i32
    return %c0_i32, %c0_i32_0 : i32, i32
  }
  func.func @transform_12(%arg0: i32) -> (i32, i32, i32) {
    %c0_i32 = arith.constant 0 : i32
    %c0_i32_0 = arith.constant 0 : i32
    %c0_i32_1 = arith.constant 0 : i32
    return %arg0, %c0_i32, %c0_i32_0 : i32, i32, i32
  }
}

</mosaic_0001>

<llo_original>
// kernel: tpu_custom_call.1
$region0: #{tpu_custom_call.1}
  #allocation0 [shape = 'u32[]', space=smem, size = 0x4, offset = 0x4, fixed_abs, tag = 'smem constant byte address 0x4 - core index']
  #allocation1 [shape = 'u32[144,128]{1,0:T(1,128)}', space=vmem, size = 0x12000, scoped, tag = 'internal scratch']
  %s0 = inlined_call_operand.vmem [shape: f32[2,16,80], index: 0, kind: input, shape index: {}]
  %s1 = inlined_call_operand.vmem [shape: f32[2,16,8], index: 1, kind: input, shape index: {}]
  %s2 = inlined_call_operand.vmem [shape: f32[5,8,32], index: 2, kind: input, shape index: {}]
  %s3 = inlined_call_operand.vmem [shape: f32[1,32], index: 3, kind: input, shape index: {}]
  %s4 = inlined_call_operand.vmem [shape: f32[5,32,16], index: 4, kind: input, shape index: {}]
  %s5 = inlined_call_operand.vmem [shape: f32[1,16], index: 5, kind: input, shape index: {}]
  %s6 = inlined_call_operand.vmem [shape: f32[16,32], index: 6, kind: input, shape index: {}]
  %s7 = inlined_call_operand.vmem [shape: f32[8,32], index: 7, kind: input, shape index: {}]
  %s8 = inlined_call_operand.vmem [shape: f32[1,32], index: 8, kind: input, shape index: {}]
  %s9 = inlined_call_operand.vmem [shape: f32[16,32], index: 9, kind: input, shape index: {}]
  %s10 = inlined_call_operand.vmem [shape: f32[8,32], index: 10, kind: input, shape index: {}]
  %s11 = inlined_call_operand.vmem [shape: f32[1,32], index: 11, kind: input, shape index: {}]
  %s12 = inlined_call_operand.hbm [shape: f32[2,1,32], index: 12, kind: output, shape index: {}]
  %s13 = sld [smem:[#allocation0]]
  $region81: #{tpu_custom_call.1} parent=0
    _
  %s15 = ssub.s32 1, %s13
  %s16 = scalar_select 0, %s15, %s13
  $region1: #{tpu_custom_call.1} parent=0
    #allocation2 [shape = 'u8[1024]{0}', space=vmem, size = 0x400, scoped, tag = 'output window, operand 0']
    #allocation3 [shape = 's32[2]{0}', space=sflag, size = 0x8, scoped, tag = 'scoped memory for tpu_custom_call.1']
    %17 = vsyncpa [#allocation3], 0
    %s18 = scalar_lea.sflag [#allocation3], 1
    %19 = vsyncpa %s18, 0
    loop: start=0, step=1, limit=4
    $region2: #{tpu_custom_call.1} parent=1 // loop_pre_header
      _
    $region3: #{tpu_custom_call.1} parent=1 // loop_header
      %s21 = sphi 0, %s25
      %p22 = scmp.ge.s32.totalorder %s21, 4
      %s31 = sphi 0, %s33
      %s34 = sphi 0, %s31
      %s35 = sphi 0, %s34
      %s51 = sphi 0, %s35
      %s57 = sphi 0, %s59
      %s60 = sphi 0, %s57
      %s61 = sphi 0, %s60
      %s77 = sphi 0, %s61
      %s81 = sphi 0, %s81
      %s83 = sphi 0, %s81
      %s84 = sphi 0, %s83
      %s98 = sphi 0, %s84
      %s102 = sphi 0, %s102
      %s104 = sphi 0, %s102
      %s105 = sphi 0, %s104
      %s119 = sphi 0, %s105
      %s123 = sphi 0, %s123
      %s125 = sphi 0, %s123
      %s126 = sphi 0, %s125
      %s140 = sphi 0, %s126
      %s144 = sphi 0, %s144
      %s146 = sphi 0, %s144
      %s147 = sphi 0, %s146
      %s161 = sphi 0, %s147
      %s165 = sphi 0, %s165
      %s167 = sphi 0, %s165
      %s168 = sphi 0, %s167
      %s182 = sphi 0, %s168
      %s186 = sphi 0, %s186
      %s188 = sphi 0, %s186
      %s189 = sphi 0, %s188
      %s203 = sphi 0, %s189
      %s207 = sphi 0, %s207
      %s209 = sphi 0, %s207
      %s210 = sphi 0, %s209
      %s224 = sphi 0, %s210
      %s228 = sphi 0, %s228
      %s230 = sphi 0, %s228
      %s231 = sphi 0, %s230
      %s245 = sphi 0, %s231
      %s249 = sphi 0, %s249
      %s251 = sphi 0, %s249
      %s252 = sphi 0, %s251
      %s266 = sphi 0, %s252
      %s270 = sphi 0, %s270
      %s272 = sphi 0, %s270
      %s273 = sphi 0, %s272
      %s287 = sphi 0, %s273
      %s293 = sphi 0, %s295
      %s296 = sphi 0, %s293
      %s297 = sphi 0, %s296
      %s313 = sphi 0, %s297
    $region4: #{tpu_custom_call.1} parent=1 // loop_header_branch
      %24 = sbr.rel (%p22) target = $region8
    $region5: #{tpu_custom_call.1} parent=1 // loop_body
      %s26 = ssub.s32 %s21, 1
      %s27 = ssub.s32 %s21, 2
      %s28 = sadd.s32 %s21, 1
      %s29 = ssub.s32 %s21, %s28
      %p30 = scmp.eq.s32.totalorder %s29, 0
      %s32 = sadd.s32 %s31, 1
      %s33 = scalar_select %p30, %s31, %s32
      %p36 = pneg %p30
      %p37 = scmp.eq.s32.totalorder %s21, 1
      %p38 = por %p36, %p37
      %p39 = scmp.ne.s32.totalorder %s31, %s34
      %p40 = scmp.eq.s32.totalorder %s21, 0
      %p41 = por %p39, %p40
      %p42 = scmp.ne.s32.totalorder %s31, %s34
      %p43 = scmp.eq.s32.totalorder %s26, 1
      %p44 = por %p42, %p43
      %p45 = scmp.ne.s32.totalorder %s34, %s35
      %p46 = scmp.eq.s32.totalorder %s26, 0
      %p47 = por %p45, %p46
      %p48 = scmp.ne.s32.totalorder %s34, %s35
      %p49 = scmp.eq.s32.totalorder %s27, 1
      %p50 = por %p48, %p49
      %p52 = scmp.ne.s32.totalorder %s35, %s51
      %p53 = scmp.eq.s32.totalorder %s27, 0
      %p54 = por %p52, %p53
      %s55 = ssub.s32 %s21, %s28
      %p56 = scmp.eq.s32.totalorder %s55, 0
      %s58 = sadd.s32 %s57, 1
      %s59 = scalar_select %p56, %s57, %s58
      %p62 = pneg %p56
      %p63 = scmp.eq.s32.totalorder %s21, 1
      %p64 = por %p62, %p63
      %p65 = scmp.ne.s32.totalorder %s57, %s60
      %p66 = scmp.eq.s32.totalorder %s21, 0
      %p67 = por %p65, %p66
      %p68 = scmp.ne.s32.totalorder %s57, %s60
      %p69 = scmp.eq.s32.totalorder %s26, 1
      %p70 = por %p68, %p69
      %p71 = scmp.ne.s32.totalorder %s60, %s61
      %p72 = scmp.eq.s32.totalorder %s26, 0
      %p73 = por %p71, %p72
      %p74 = scmp.ne.s32.totalorder %s60, %s61
      %p75 = scmp.eq.s32.totalorder %s27, 1
      %p76 = por %p74, %p75
      %p78 = scmp.ne.s32.totalorder %s61, %s77
      %p79 = scmp.eq.s32.totalorder %s27, 0
      %p80 = por %p78, %p79
      %s82 = sadd.s32 %s81, 1
      %p85 = scmp.eq.s32.totalorder %s21, 1
      %p86 = scmp.ne.s32.totalorder %s81, %s83
      %p87 = scmp.eq.s32.totalorder %s21, 0
      %p88 = por %p86, %p87
      %p89 = scmp.ne.s32.totalorder %s81, %s83
      %p90 = scmp.eq.s32.totalorder %s26, 1
      %p91 = por %p89, %p90
      %p92 = scmp.ne.s32.totalorder %s83, %s84
      %p93 = scmp.eq.s32.totalorder %s26, 0
      %p94 = por %p92, %p93
      %p95 = scmp.ne.s32.totalorder %s83, %s84
      %p96 = scmp.eq.s32.totalorder %s27, 1
      %p97 = por %p95, %p96
      %p99 = scmp.ne.s32.totalorder %s84, %s98
      %p100 = scmp.eq.s32.totalorder %s27, 0
      %p101 = por %p99, %p100
      %s103 = sadd.s32 %s102, 1
      %p106 = scmp.eq.s32.totalorder %s21, 1
      %p107 = scmp.ne.s32.totalorder %s102, %s104
      %p108 = scmp.eq.s32.totalorder %s21, 0
      %p109 = por %p107, %p108
      %p110 = scmp.ne.s32.totalorder %s102, %s104
      %p111 = scmp.eq.s32.totalorder %s26, 1
      %p112 = por %p110, %p111
      %p113 = scmp.ne.s32.totalorder %s104, %s105
      %p114 = scmp.eq.s32.totalorder %s26, 0
      %p115 = por %p113, %p114
      %p116 = scmp.ne.s32.totalorder %s104, %s105
      %p117 = scmp.eq.s32.totalorder %s27, 1
      %p118 = por %p116, %p117
      %p120 = scmp.ne.s32.totalorder %s105, %s119
      %p121 = scmp.eq.s32.totalorder %s27, 0
      %p122 = por %p120, %p121
      %s124 = sadd.s32 %s123, 1
      %p127 = scmp.eq.s32.totalorder %s21, 1
      %p128 = scmp.ne.s32.totalorder %s123, %s125
      %p129 = scmp.eq.s32.totalorder %s21, 0
      %p130 = por %p128, %p129
      %p131 = scmp.ne.s32.totalorder %s123, %s125
      %p132 = scmp.eq.s32.totalorder %s26, 1
      %p133 = por %p131, %p132
      %p134 = scmp.ne.s32.totalorder %s125, %s126
      %p135 = scmp.eq.s32.totalorder %s26, 0
      %p136 = por %p134, %p135
      %p137 = scmp.ne.s32.totalorder %s125, %s126
      %p138 = scmp.eq.s32.totalorder %s27, 1
      %p139 = por %p137, %p138
      %p141 = scmp.ne.s32.totalorder %s126, %s140
      %p142 = scmp.eq.s32.totalorder %s27, 0
      %p143 = por %p141, %p142
      %s145 = sadd.s32 %s144, 1
      %p148 = scmp.eq.s32.totalorder %s21, 1
      %p149 = scmp.ne.s32.totalorder %s144, %s146
      %p150 = scmp.eq.s32.totalorder %s21, 0
      %p151 = por %p149, %p150
      %p152 = scmp.ne.s32.totalorder %s144, %s146
      %p153 = scmp.eq.s32.totalorder %s26, 1
      %p154 = por %p152, %p153
      %p155 = scmp.ne.s32.totalorder %s146, %s147
      %p156 = scmp.eq.s32.totalorder %s26, 0
      %p157 = por %p155, %p156
      %p158 = scmp.ne.s32.totalorder %s146, %s147
      %p159 = scmp.eq.s32.totalorder %s27, 1
      %p160 = por %p158, %p159
      %p162 = scmp.ne.s32.totalorder %s147, %s161
      %p163 = scmp.eq.s32.totalorder %s27, 0
      %p164 = por %p162, %p163
      %s166 = sadd.s32 %s165, 1
      %p169 = scmp.eq.s32.totalorder %s21, 1
      %p170 = scmp.ne.s32.totalorder %s165, %s167
      %p171 = scmp.eq.s32.totalorder %s21, 0
      %p172 = por %p170, %p171
      %p173 = scmp.ne.s32.totalorder %s165, %s167
      %p174 = scmp.eq.s32.totalorder %s26, 1
      %p175 = por %p173, %p174
      %p176 = scmp.ne.s32.totalorder %s167, %s168
      %p177 = scmp.eq.s32.totalorder %s26, 0
      %p178 = por %p176, %p177
      %p179 = scmp.ne.s32.totalorder %s167, %s168
      %p180 = scmp.eq.s32.totalorder %s27, 1
      %p181 = por %p179, %p180
      %p183 = scmp.ne.s32.totalorder %s168, %s182
      %p184 = scmp.eq.s32.totalorder %s27, 0
      %p185 = por %p183, %p184
      %s187 = sadd.s32 %s186, 1
      %p190 = scmp.eq.s32.totalorder %s21, 1
      %p191 = scmp.ne.s32.totalorder %s186, %s188
      %p192 = scmp.eq.s32.totalorder %s21, 0
      %p193 = por %p191, %p192
      %p194 = scmp.ne.s32.totalorder %s186, %s188
      %p195 = scmp.eq.s32.totalorder %s26, 1
      %p196 = por %p194, %p195
      %p197 = scmp.ne.s32.totalorder %s188, %s189
      %p198 = scmp.eq.s32.totalorder %s26, 0
      %p199 = por %p197, %p198
      %p200 = scmp.ne.s32.totalorder %s188, %s189
      %p201 = scmp.eq.s32.totalorder %s27, 1
      %p202 = por %p200, %p201
      %p204 = scmp.ne.s32.totalorder %s189, %s203
      %p205 = scmp.eq.s32.totalorder %s27, 0
      %p206 = por %p204, %p205
      %s208 = sadd.s32 %s207, 1
      %p211 = scmp.eq.s32.totalorder %s21, 1
      %p212 = scmp.ne.s32.totalorder %s207, %s209
      %p213 = scmp.eq.s32.totalorder %s21, 0
      %p214 = por %p212, %p213
      %p215 = scmp.ne.s32.totalorder %s207, %s209
      %p216 = scmp.eq.s32.totalorder %s26, 1
      %p217 = por %p215, %p216
      %p218 = scmp.ne.s32.totalorder %s209, %s210
      %p219 = scmp.eq.s32.totalorder %s26, 0
      %p220 = por %p218, %p219
      %p221 = scmp.ne.s32.totalorder %s209, %s210
      %p222 = scmp.eq.s32.totalorder %s27, 1
      %p223 = por %p221, %p222
      %p225 = scmp.ne.s32.totalorder %s210, %s224
      %p226 = scmp.eq.s32.totalorder %s27, 0
      %p227 = por %p225, %p226
      %s229 = sadd.s32 %s228, 1
      %p232 = scmp.eq.s32.totalorder %s21, 1
      %p233 = scmp.ne.s32.totalorder %s228, %s230
      %p234 = scmp.eq.s32.totalorder %s21, 0
      %p235 = por %p233, %p234
      %p236 = scmp.ne.s32.totalorder %s228, %s230
      %p237 = scmp.eq.s32.totalorder %s26, 1
      %p238 = por %p236, %p237
      %p239 = scmp.ne.s32.totalorder %s230, %s231
      %p240 = scmp.eq.s32.totalorder %s26, 0
      %p241 = por %p239, %p240
      %p242 = scmp.ne.s32.totalorder %s230, %s231
      %p243 = scmp.eq.s32.totalorder %s27, 1
      %p244 = por %p242, %p243
      %p246 = scmp.ne.s32.totalorder %s231, %s245
      %p247 = scmp.eq.s32.totalorder %s27, 0
      %p248 = por %p246, %p247
      %s250 = sadd.s32 %s249, 1
      %p253 = scmp.eq.s32.totalorder %s21, 1
      %p254 = scmp.ne.s32.totalorder %s249, %s251
      %p255 = scmp.eq.s32.totalorder %s21, 0
      %p256 = por %p254, %p255
      %p257 = scmp.ne.s32.totalorder %s249, %s251
      %p258 = scmp.eq.s32.totalorder %s26, 1
      %p259 = por %p257, %p258
      %p260 = scmp.ne.s32.totalorder %s251, %s252
      %p261 = scmp.eq.s32.totalorder %s26, 0
      %p262 = por %p260, %p261
      %p263 = scmp.ne.s32.totalorder %s251, %s252
      %p264 = scmp.eq.s32.totalorder %s27, 1
      %p265 = por %p263, %p264
      %p267 = scmp.ne.s32.totalorder %s252, %s266
      %p268 = scmp.eq.s32.totalorder %s27, 0
      %p269 = por %p267, %p268
      %s271 = sadd.s32 %s270, 1
      %p274 = scmp.eq.s32.totalorder %s21, 1
      %p275 = scmp.ne.s32.totalorder %s270, %s272
      %p276 = scmp.eq.s32.totalorder %s21, 0
      %p277 = por %p275, %p276
      %p278 = scmp.ne.s32.totalorder %s270, %s272
      %p279 = scmp.eq.s32.totalorder %s26, 1
      %p280 = por %p278, %p279
      %p281 = scmp.ne.s32.totalorder %s272, %s273
      %p282 = scmp.eq.s32.totalorder %s26, 0
      %p283 = por %p281, %p282
      %p284 = scmp.ne.s32.totalorder %s272, %s273
      %p285 = scmp.eq.s32.totalorder %s27, 1
      %p286 = por %p284, %p285
      %p288 = scmp.ne.s32.totalorder %s273, %s287
      %p289 = scmp.eq.s32.totalorder %s27, 0
      %p290 = por %p288, %p289
      %s291 = ssub.s32 %s21, %s28
      %p292 = scmp.eq.s32.totalorder %s291, 0
      %s294 = sadd.s32 %s293, 1
      %s295 = scalar_select %p292, %s293, %s294
      %p298 = pneg %p292
      %p299 = scmp.eq.s32.totalorder %s21, 1
      %p300 = por %p298, %p299
      %p301 = scmp.ne.s32.totalorder %s293, %s296
      %p302 = scmp.eq.s32.totalorder %s21, 0
      %p303 = por %p301, %p302
      %p304 = scmp.ne.s32.totalorder %s293, %s296
      %p305 = scmp.eq.s32.totalorder %s26, 1
      %p306 = por %p304, %p305
      %p307 = scmp.ne.s32.totalorder %s296, %s297
      %p308 = scmp.eq.s32.totalorder %s26, 0
      %p309 = por %p307, %p308
      %p310 = scmp.ne.s32.totalorder %s296, %s297
      %p311 = scmp.eq.s32.totalorder %s27, 1
      %p312 = por %p310, %p311
      %p314 = scmp.ne.s32.totalorder %s297, %s313
      %p315 = scmp.eq.s32.totalorder %s27, 0
      %p316 = por %p314, %p315
      %p317 = scmp.le.s32.totalorder 1, %s21
      %p318 = scmp.lt.s32.totalorder %s21, 3
      %p319 = pnand %p317, %p318
      %p320 = pneg %p319
      // Predicated region
      $region9: #{tpu_custom_call.1} parent=5 // pred_check
        _
      $region10: #{tpu_custom_call.1} parent=5 // pred_check_branch
        %322 = sbr.rel (%p319) target = $region12
      $region11: #{tpu_custom_call.1} parent=5 // pred_region
        %s323 = ssub.s32 %s21, 1
        // Predicated region
        $region13: #{tpu_custom_call.1} parent=11 // pred_check
          %p324 = pneg %p94
        $region14: #{tpu_custom_call.1} parent=11 // pred_check_branch
          %326 = sbr.rel (%p324) target = $region16
        $region15: #{tpu_custom_call.1} parent=11 // pred_region
          _
        $region16: #{tpu_custom_call.1} parent=11 // pred_fallthru
          _
        // Predicated region
        $region17: #{tpu_custom_call.1} parent=11 // pred_check
          %p327 = pneg %p115
        $region18: #{tpu_custom_call.1} parent=11 // pred_check_branch
          %329 = sbr.rel (%p327) target = $region20
        $region19: #{tpu_custom_call.1} parent=11 // pred_region
          _
        $region20: #{tpu_custom_call.1} parent=11 // pred_fallthru
          _
        // Predicated region
        $region21: #{tpu_custom_call.1} parent=11 // pred_check
          %p330 = pneg %p136
        $region22: #{tpu_custom_call.1} parent=11 // pred_check_branch
          %332 = sbr.rel (%p330) target = $region24
        $region23: #{tpu_custom_call.1} parent=11 // pred_region
          _
        $region24: #{tpu_custom_call.1} parent=11 // pred_fallthru
          _
        // Predicated region
        $region25: #{tpu_custom_call.1} parent=11 // pred_check
          %p333 = pneg %p157
        $region26: #{tpu_custom_call.1} parent=11 // pred_check_branch
          %335 = sbr.rel (%p333) target = $region28
        $region27: #{tpu_custom_call.1} parent=11 // pred_region
          _
        $region28: #{tpu_custom_call.1} parent=11 // pred_fallthru
          _
        // Predicated region
        $region29: #{tpu_custom_call.1} parent=11 // pred_check
          %p336 = pneg %p178
        $region30: #{tpu_custom_call.1} parent=11 // pred_check_branch
          %338 = sbr.rel (%p336) target = $region32
        $region31: #{tpu_custom_call.1} parent=11 // pred_region
          _
        $region32: #{tpu_custom_call.1} parent=11 // pred_fallthru
          _
        // Predicated region
        $region33: #{tpu_custom_call.1} parent=11 // pred_check
          %p339 = pneg %p199
        $region34: #{tpu_custom_call.1} parent=11 // pred_check_branch
          %341 = sbr.rel (%p339) target = $region36
        $region35: #{tpu_custom_call.1} parent=11 // pred_region
          _
        $region36: #{tpu_custom_call.1} parent=11 // pred_fallthru
          _
        // Predicated region
        $region37: #{tpu_custom_call.1} parent=11 // pred_check
          %p342 = pneg %p220
        $region38: #{tpu_custom_call.1} parent=11 // pred_check_branch
          %344 = sbr.rel (%p342) target = $region40
        $region39: #{tpu_custom_call.1} parent=11 // pred_region
          _
        $region40: #{tpu_custom_call.1} parent=11 // pred_fallthru
          _
        // Predicated region
        $region41: #{tpu_custom_call.1} parent=11 // pred_check
          %p345 = pneg %p241
        $region42: #{tpu_custom_call.1} parent=11 // pred_check_branch
          %347 = sbr.rel (%p345) target = $region44
        $region43: #{tpu_custom_call.1} parent=11 // pred_region
          _
        $region44: #{tpu_custom_call.1} parent=11 // pred_fallthru
          _
        // Predicated region
        $region45: #{tpu_custom_call.1} parent=11 // pred_check
          %p348 = pneg %p262
        $region46: #{tpu_custom_call.1} parent=11 // pred_check_branch
          %350 = sbr.rel (%p348) target = $region48
        $region47: #{tpu_custom_call.1} parent=11 // pred_region
          _
        $region48: #{tpu_custom_call.1} parent=11 // pred_fallthru
          _
        // Predicated region
        $region49: #{tpu_custom_call.1} parent=11 // pred_check
          %p351 = pneg %p283
        $region50: #{tpu_custom_call.1} parent=11 // pred_check_branch
          %353 = sbr.rel (%p351) target = $region52
        $region51: #{tpu_custom_call.1} parent=11 // pred_region
          _
        $region52: #{tpu_custom_call.1} parent=11 // pred_fallthru
          _
      $region12: #{tpu_custom_call.1} parent=5 // pred_fallthru
        _
      %p354 = scmp.lt.s32.totalorder %s21, 2
      // Predicated region
      $region53: #{tpu_custom_call.1} parent=5 // pred_check
        %p355 = pneg %p354
      $region54: #{tpu_custom_call.1} parent=5 // pred_check_branch
        %357 = sbr.rel (%p355) target = $region56
      $region55: #{tpu_custom_call.1} parent=5 // pred_region
        // Predicated region
        $region57: #{tpu_custom_call.1} parent=55 // pred_check
          %p358 = pneg %p41
        $region58: #{tpu_custom_call.1} parent=55 // pred_check_branch
          %360 = sbr.rel (%p358) target = $region60
        $region59: #{tpu_custom_call.1} parent=55 // pred_region
          %p361 = scmp.lt.s32.totalorder %s21, 1
          %s362 = scalar_select %p361, %s21, 1
          %s363 = smul.addr %s362, 2
          %s364 = smul.addr %s363, 8
          %s365 = scalar_lea.vmem %s0, %s364
        $region60: #{tpu_custom_call.1} parent=55 // pred_fallthru
          _
        // Predicated region
        $region61: #{tpu_custom_call.1} parent=55 // pred_check
          %p366 = pneg %p67
        $region62: #{tpu_custom_call.1} parent=55 // pred_check_branch
          %368 = sbr.rel (%p366) target = $region64
        $region63: #{tpu_custom_call.1} parent=55 // pred_region
          %p369 = scmp.lt.s32.totalorder %s21, 1
          %s370 = scalar_select %p369, %s21, 1
          %s371 = smul.addr %s370, 2
          %s372 = smul.addr %s371, 8
          %s373 = scalar_lea.vmem %s1, %s372
        $region64: #{tpu_custom_call.1} parent=55 // pred_fallthru
          _
      $region56: #{tpu_custom_call.1} parent=5 // pred_fallthru
        _
      %p374 = scmp.le.s32.totalorder 1, %s21
      %p375 = scmp.lt.s32.totalorder %s21, 3
      %p376 = pnand %p374, %p375
      %p377 = pneg %p376
      // Predicated region
      $region65: #{tpu_custom_call.1} parent=5 // pred_check
        _
      $region66: #{tpu_custom_call.1} parent=5 // pred_check_branch
        %379 = sbr.rel (%p376) target = $region68
      $region67: #{tpu_custom_call.1} parent=5 // pred_region
        %s380 = ssub.s32 %s21, 1
        %p381 = scmp.lt.s32.totalorder %s26, 1
        %s382 = scalar_select %p381, %s26, 1
        %s383 = smul.addr %s382, 2
        %s384 = smul.addr %s383, 8
        %s385 = scalar_lea.vmem %s0, %s384
        %p386 = pneg %p47
        %p387 = pneg %p44
        %p388 = scmp.lt.s32.totalorder %s26, 1
        %s389 = scalar_select %p388, %s26, 1
        %s390 = smul.addr %s389, 2
        %s391 = smul.addr %s390, 8
        %s392 = scalar_lea.vmem %s1, %s391
        %p393 = pneg %p73
        %p394 = pneg %p70
        %p395 = pneg %p94
        %p396 = pneg %p91
        %p397 = pneg %p115
        %p398 = pneg %p112
        %p399 = pneg %p136
        %p400 = pneg %p133
        %p401 = pneg %p157
        %p402 = pneg %p154
        %p403 = pneg %p178
        %p404 = pneg %p175
        %p405 = pneg %p199
        %p406 = pneg %p196
        %p407 = pneg %p220
        %p408 = pneg %p217
        %p409 = pneg %p241
        %p410 = pneg %p238
        %p411 = pneg %p262
        %p412 = pneg %p259
        %p413 = pneg %p283
        %p414 = pneg %p280
        %p415 = pneg %p309
        %p416 = pneg %p306
        %s417 = sand.u32 %s296, 1
        %s418 = scalar_lea.sflag [#allocation3], %s417
        %s419 = sand.u32 %s296, 1
        %s420 = scalar_lea.vmem [#allocation2], %s419
        %p421 = scmp.lt.s32.totalorder %s26, 1
        %s422 = scalar_select %p421, %s26, 1
        %s423 = smul.addr %s422, 2
        %s424 = smul.addr %s423, 8
        %s425 = scalar_lea.vmem %s0, %s424
        %p426 = scmp.lt.s32.totalorder %s26, 1
        %s427 = scalar_select %p426, %s26, 1
        %s428 = smul.addr %s427, 2
        %s429 = smul.addr %s428, 8
        %s430 = scalar_lea.vmem %s1, %s429
        %v431 = vld [vmem:[%s425] sm:$0xff]
        %v432 = vld [vmem:[%s425 + $0x8] sm:$0xff]
        %v433 = vld [vmem:[%s430] sm:$0xff]
        %v434 = vld [vmem:[%s430 + $0x8] sm:$0xff]
        %v435 = vld [vmem:[%s2] sm:$0xff]
        %vm436 = vcmask 64512
        %v438 = vsel %vm436, %v433, 0
        %v441 = vsel %vm436, %v434, 0
        %443 = vmatprep.subr.mxu0 0.0
        %444 = vmatpush1.msra.mxu0 %v435
        %445 = vmatprep.subr.mxu0 0.0
        %446 = vmatpush1.msra.mxu0 0.0
        %447 = vmatprep.subr.mxu0 0.0
        %448 = vmatpush1.msra.mxu0 0.0
        %449 = vmatprep.subr.mxu0 0.0
        %450 = vmatpush1.msra.mxu0 0.0
        %451 = vmatprep.subr.mxu0 0.0
        %452 = vmatpush1.msra.mxu0 0.0
        %453 = vmatprep.subr.mxu0 0.0
        %454 = vmatpush1.msra.mxu0 0.0
        %455 = vmatprep.subr.mxu0 0.0
        %456 = vmatpush1.msra.mxu0 0.0
        %457 = vmatprep.subr.mxu0 0.0
        %458 = vmatpush1.msra.mxu0 0.0
        %459 = vmatprep.subr.mxu0 0.0
        %460 = vmatpush1.msra.mxu0 0.0
        %461 = vmatprep.subr.mxu0 0.0
        %462 = vmatpush1.msra.mxu0 0.0
        %463 = vmatprep.subr.mxu0 0.0
        %464 = vmatpush1.msra.mxu0 0.0
        %465 = vmatprep.subr.mxu0 0.0
        %466 = vmatpush1.msra.mxu0 0.0
        %467 = vmatprep.subr.mxu0 0.0
        %468 = vmatpush1.msra.mxu0 0.0
        %469 = vmatprep.subr.mxu0 0.0
        %470 = vmatpush1.msra.mxu0 0.0
        %471 = vmatprep.subr.mxu0 0.0
        %472 = vmatpush1.msra.mxu0 0.0
        %473 = vmatprep.subr.mxu0 0.0
        %474 = vmatpush1.msra.mxu0 0.0
        %475 = vmatprep.subr.mxu0 0.0
        %476 = vmatpush1.msra.mxu0 0.0
        %477 = vmatprep.subr.mxu0 0.0
        %478 = vmatpush1.msra.mxu0 0.0
        %479 = vmatprep.subr.mxu0 0.0
        %480 = vmatpush1.msra.mxu0 0.0
        %481 = vmatprep.subr.mxu0 0.0
        %482 = vmatpush1.msra.mxu0 0.0
        %483 = vmatprep.subr.mxu0 0.0
        %484 = vmatpush1.msra.mxu0 0.0
        %485 = vmatprep.subr.mxu0 0.0
        %486 = vmatpush1.msra.mxu0 0.0
        %487 = vmatprep.subr.mxu0 0.0
        %488 = vmatpush1.msra.mxu0 0.0
        %489 = vmatprep.subr.mxu0 0.0
        %490 = vmatpush1.msra.mxu0 0.0
        %491 = vmatprep.subr.mxu0 0.0
        %492 = vmatpush1.msra.mxu0 0.0
        %493 = vmatprep.subr.mxu0 0.0
        %494 = vmatpush1.msra.mxu0 0.0
        %495 = vmatprep.subr.mxu0 0.0
        %496 = vmatpush1.msra.mxu0 0.0
        %497 = vmatprep.subr.mxu0 0.0
        %498 = vmatpush1.msra.mxu0 0.0
        %499 = vmatprep.subr.mxu0 0.0
        %500 = vmatpush1.msra.mxu0 0.0
        %501 = vmatprep.subr.mxu0 0.0
        %502 = vmatpush1.msra.mxu0 0.0
        %503 = vmatprep.subr.mxu0 0.0
        %504 = vmatpush1.msra.mxu0 0.0
        %505 = vmatprep.subr.mxu0 0.0
        %506 = vmatpush1.msra.mxu0 0.0
        %507 = vmatprep.mubr.f32.mxu0 0.0
        %508 = vmatmul.mubr.f32.gmra.mrb[0].mxu0 %v438
        %v509 = vpop.f32.mrb[0].mxu0
        %v510 = vadd.f32 0.0, %v509
        %v511 = vpop.f32.mrb[0].mxu0
        %512 = vmatprep.mubr.f32.mxu0 0.0
        %513 = vmatmul.mubr.f32.gmra.mrb[0].mxu0 %v441
        %v514 = vpop.f32.mrb[0].mxu0
        %v515 = vadd.f32 0.0, %v514
        %v516 = vpop.f32.mrb[0].mxu0
        %517 = vdwg.mxu0
        %s518 = scalar_lea.vmem %s2, 8
        %v519 = vld [vmem:[%s518] sm:$0xff]
        %520 = vmatprep.subr.mxu0 0.0
        %521 = vmatpush1.msra.mxu0 %v519
        %522 = vmatprep.subr.mxu0 0.0
        %523 = vmatpush1.msra.mxu0 0.0
        %524 = vmatprep.subr.mxu0 0.0
        %525 = vmatpush1.msra.mxu0 0.0
        %526 = vmatprep.subr.mxu0 0.0
        %527 = vmatpush1.msra.mxu0 0.0
        %528 = vmatprep.subr.mxu0 0.0
        %529 = vmatpush1.msra.mxu0 0.0
        %530 = vmatprep.subr.mxu0 0.0
        %531 = vmatpush1.msra.mxu0 0.0
        %532 = vmatprep.subr.mxu0 0.0
        %533 = vmatpush1.msra.mxu0 0.0
        %534 = vmatprep.subr.mxu0 0.0
        %535 = vmatpush1.msra.mxu0 0.0
        %536 = vmatprep.subr.mxu0 0.0
        %537 = vmatpush1.msra.mxu0 0.0
        %538 = vmatprep.subr.mxu0 0.0
        %539 = vmatpush1.msra.mxu0 0.0
        %540 = vmatprep.subr.mxu0 0.0
        %541 = vmatpush1.msra.mxu0 0.0
        %542 = vmatprep.subr.mxu0 0.0
        %543 = vmatpush1.msra.mxu0 0.0
        %544 = vmatprep.subr.mxu0 0.0
        %545 = vmatpush1.msra.mxu0 0.0
        %546 = vmatprep.subr.mxu0 0.0
        %547 = vmatpush1.msra.mxu0 0.0
        %548 = vmatprep.subr.mxu0 0.0
        %549 = vmatpush1.msra.mxu0 0.0
        %550 = vmatprep.subr.mxu0 0.0
        %551 = vmatpush1.msra.mxu0 0.0
        %552 = vmatprep.subr.mxu0 0.0
        %553 = vmatpush1.msra.mxu0 0.0
        %554 = vmatprep.subr.mxu0 0.0
        %555 = vmatpush1.msra.mxu0 0.0
        %556 = vmatprep.subr.mxu0 0.0
        %557 = vmatpush1.msra.mxu0 0.0
        %558 = vmatprep.subr.mxu0 0.0
        %559 = vmatpush1.msra.mxu0 0.0
        %560 = vmatprep.subr.mxu0 0.0
        %561 = vmatpush1.msra.mxu0 0.0
        %562 = vmatprep.subr.mxu0 0.0
        %563 = vmatpush1.msra.mxu0 0.0
        %564 = vmatprep.subr.mxu0 0.0
        %565 = vmatpush1.msra.mxu0 0.0
        %566 = vmatprep.subr.mxu0 0.0
        %567 = vmatpush1.msra.mxu0 0.0
        %568 = vmatprep.subr.mxu0 0.0
        %569 = vmatpush1.msra.mxu0 0.0
        %570 = vmatprep.subr.mxu0 0.0
        %571 = vmatpush1.msra.mxu0 0.0
        %572 = vmatprep.subr.mxu0 0.0
        %573 = vmatpush1.msra.mxu0 0.0
        %574 = vmatprep.subr.mxu0 0.0
        %575 = vmatpush1.msra.mxu0 0.0
        %576 = vmatprep.subr.mxu0 0.0
        %577 = vmatpush1.msra.mxu0 0.0
        %578 = vmatprep.subr.mxu0 0.0
        %579 = vmatpush1.msra.mxu0 0.0
        %580 = vmatprep.subr.mxu0 0.0
        %581 = vmatpush1.msra.mxu0 0.0
        %582 = vmatprep.subr.mxu0 0.0
        %583 = vmatpush1.msra.mxu0 0.0
        %584 = vmatprep.mubr.f32.mxu0 0.0
        %585 = vmatmul.mubr.f32.gmra.mrb[0].mxu0 %v438
        %v586 = vpop.f32.mrb[0].mxu0
        %v587 = vadd.f32 0.0, %v586
        %v588 = vpop.f32.mrb[0].mxu0
        %589 = vmatprep.mubr.f32.mxu0 0.0
        %590 = vmatmul.mubr.f32.gmra.mrb[0].mxu0 %v441
        %v591 = vpop.f32.mrb[0].mxu0
        %v592 = vadd.f32 0.0, %v591
        %v593 = vpop.f32.mrb[0].mxu0
        %594 = vdwg.mxu0
        %s595 = scalar_lea.vmem %s2, 16
        %v596 = vld [vmem:[%s595] sm:$0xff]
        %597 = vmatprep.subr.mxu0 0.0
        %598 = vmatpush1.msra.mxu0 %v596
        %599 = vmatprep.subr.mxu0 0.0
        %600 = vmatpush1.msra.mxu0 0.0
        %601 = vmatprep.subr.mxu0 0.0
        %602 = vmatpush1.msra.mxu0 0.0
        %603 = vmatprep.subr.mxu0 0.0
        %604 = vmatpush1.msra.mxu0 0.0
        %605 = vmatprep.subr.mxu0 0.0
        %606 = vmatpush1.msra.mxu0 0.0
        %607 = vmatprep.subr.mxu0 0.0
        %608 = vmatpush1.msra.mxu0 0.0
        %609 = vmatprep.subr.mxu0 0.0
        %610 = vmatpush1.msra.mxu0 0.0
        %611 = vmatprep.subr.mxu0 0.0
        %612 = vmatpush1.msra.mxu0 0.0
        %613 = vmatprep.subr.mxu0 0.0
        %614 = vmatpush1.msra.mxu0 0.0
        %615 = vmatprep.subr.mxu0 0.0
        %616 = vmatpush1.msra.mxu0 0.0
        %617 = vmatprep.subr.mxu0 0.0
        %618 = vmatpush1.msra.mxu0 0.0
        %619 = vmatprep.subr.mxu0 0.0
        %620 = vmatpush1.msra.mxu0 0.0
        %621 = vmatprep.subr.mxu0 0.0
        %622 = vmatpush1.msra.mxu0 0.0
        %623 = vmatprep.subr.mxu0 0.0
        %624 = vmatpush1.msra.mxu0 0.0
        %625 = vmatprep.subr.mxu0 0.0
        %626 = vmatpush1.msra.mxu0 0.0
        %627 = vmatprep.subr.mxu0 0.0
        %628 = vmatpush1.msra.mxu0 0.0
        %629 = vmatprep.subr.mxu0 0.0
        %630 = vmatpush1.msra.mxu0 0.0
        %631 = vmatprep.subr.mxu0 0.0
        %632 = vmatpush1.msra.mxu0 0.0
        %633 = vmatprep.subr.mxu0 0.0
        %634 = vmatpush1.msra.mxu0 0.0
        %635 = vmatprep.subr.mxu0 0.0
        %636 = vmatpush1.msra.mxu0 0.0
        %637 = vmatprep.subr.mxu0 0.0
        %638 = vmatpush1.msra.mxu0 0.0
        %639 = vmatprep.subr.mxu0 0.0
        %640 = vmatpush1.msra.mxu0 0.0
        %641 = vmatprep.subr.mxu0 0.0
        %642 = vmatpush1.msra.mxu0 0.0
        %643 = vmatprep.subr.mxu0 0.0
        %644 = vmatpush1.msra.mxu0 0.0
        %645 = vmatprep.subr.mxu0 0.0
        %646 = vmatpush1.msra.mxu0 0.0
        %647 = vmatprep.subr.mxu0 0.0
        %648 = vmatpush1.msra.mxu0 0.0
        %649 = vmatprep.subr.mxu0 0.0
        %650 = vmatpush1.msra.mxu0 0.0
        %651 = vmatprep.subr.mxu0 0.0
        %652 = vmatpush1.msra.mxu0 0.0
        %653 = vmatprep.subr.mxu0 0.0
        %654 = vmatpush1.msra.mxu0 0.0
        %655 = vmatprep.subr.mxu0 0.0
        %656 = vmatpush1.msra.mxu0 0.0
        %657 = vmatprep.subr.mxu0 0.0
        %658 = vmatpush1.msra.mxu0 0.0
        %659 = vmatprep.subr.mxu0 0.0
        %660 = vmatpush1.msra.mxu0 0.0
        %661 = vmatprep.mubr.f32.mxu0 0.0
        %662 = vmatmul.mubr.f32.gmra.mrb[0].mxu0 %v438
        %v663 = vpop.f32.mrb[0].mxu0
        %v664 = vadd.f32 0.0, %v663
        %v665 = vpop.f32.mrb[0].mxu0
        %666 = vmatprep.mubr.f32.mxu0 0.0
        %667 = vmatmul.mubr.f32.gmra.mrb[0].mxu0 %v441
        %v668 = vpop.f32.mrb[0].mxu0
        %v669 = vadd.f32 0.0, %v668
        %v670 = vpop.f32.mrb[0].mxu0
        %671 = vdwg.mxu0
        %s672 = scalar_lea.vmem %s2, 24
        %v673 = vld [vmem:[%s672] sm:$0xff]
        %674 = vmatprep.subr.mxu0 0.0
        %675 = vmatpush1.msra.mxu0 %v673
        %676 = vmatprep.subr.mxu0 0.0
        %677 = vmatpush1.msra.mxu0 0.0
        %678 = vmatprep.subr.mxu0 0.0
        %679 = vmatpush1.msra.mxu0 0.0
        %680 = vmatprep.subr.mxu0 0.0
        %681 = vmatpush1.msra.mxu0 0.0
        %682 = vmatprep.subr.mxu0 0.0
        %683 = vmatpush1.msra.mxu0 0.0
        %684 = vmatprep.subr.mxu0 0.0
        %685 = vmatpush1.msra.mxu0 0.0
        %686 = vmatprep.subr.mxu0 0.0
        %687 = vmatpush1.msra.mxu0 0.0
        %688 = vmatprep.subr.mxu0 0.0
        %689 = vmatpush1.msra.mxu0 0.0
        %690 = vmatprep.subr.mxu0 0.0
        %691 = vmatpush1.msra.mxu0 0.0
        %692 = vmatprep.subr.mxu0 0.0
        %693 = vmatpush1.msra.mxu0 0.0
        %694 = vmatprep.subr.mxu0 0.0
        %695 = vmatpush1.msra.mxu0 0.0
        %696 = vmatprep.subr.mxu0 0.0
        %697 = vmatpush1.msra.mxu0 0.0
        %698 = vmatprep.subr.mxu0 0.0
        %699 = vmatpush1.msra.mxu0 0.0
        %700 = vmatprep.subr.mxu0 0.0
        %701 = vmatpush1.msra.mxu0 0.0
        %702 = vmatprep.subr.mxu0 0.0
        %703 = vmatpush1.msra.mxu0 0.0
        %704 = vmatprep.subr.mxu0 0.0
        %705 = vmatpush1.msra.mxu0 0.0
        %706 = vmatprep.subr.mxu0 0.0
        %707 = vmatpush1.msra.mxu0 0.0
        %708 = vmatprep.subr.mxu0 0.0
        %709 = vmatpush1.msra.mxu0 0.0
        %710 = vmatprep.subr.mxu0 0.0
        %711 = vmatpush1.msra.mxu0 0.0
        %712 = vmatprep.subr.mxu0 0.0
        %713 = vmatpush1.msra.mxu0 0.0
        %714 = vmatprep.subr.mxu0 0.0
        %715 = vmatpush1.msra.mxu0 0.0
        %716 = vmatprep.subr.mxu0 0.0
        %717 = vmatpush1.msra.mxu0 0.0
        %718 = vmatprep.subr.mxu0 0.0
        %719 = vmatpush1.msra.mxu0 0.0
        %720 = vmatprep.subr.mxu0 0.0
        %721 = vmatpush1.msra.mxu0 0.0
        %722 = vmatprep.subr.mxu0 0.0
        %723 = vmatpush1.msra.mxu0 0.0
        %724 = vmatprep.subr.mxu0 0.0
        %725 = vmatpush1.msra.mxu0 0.0
        %726 = vmatprep.subr.mxu0 0.0
        %727 = vmatpush1.msra.mxu0 0.0
        %728 = vmatprep.subr.mxu0 0.0
        %729 = vmatpush1.msra.mxu0 0.0
        %730 = vmatprep.subr.mxu0 0.0
        %731 = vmatpush1.msra.mxu0 0.0
        %732 = vmatprep.subr.mxu0 0.0
        %733 = vmatpush1.msra.mxu0 0.0
        %734 = vmatprep.subr.mxu0 0.0
        %735 = vmatpush1.msra.mxu0 0.0
        %736 = vmatprep.subr.mxu0 0.0
        %737 = vmatpush1.msra.mxu0 0.0
        %738 = vmatprep.mubr.f32.mxu0 0.0
        %739 = vmatmul.mubr.f32.gmra.mrb[0].mxu0 %v438
        %v740 = vpop.f32.mrb[0].mxu0
        %v741 = vadd.f32 0.0, %v740
        %v742 = vpop.f32.mrb[0].mxu0
        %743 = vmatprep.mubr.f32.mxu0 0.0
        %744 = vmatmul.mubr.f32.gmra.mrb[0].mxu0 %v441
        %v745 = vpop.f32.mrb[0].mxu0
        %v746 = vadd.f32 0.0, %v745
        %v747 = vpop.f32.mrb[0].mxu0
        %748 = vdwg.mxu0
        %s749 = scalar_lea.vmem %s2, 32
        %v750 = vld [vmem:[%s749] sm:$0xff]
        %751 = vmatprep.subr.mxu0 0.0
        %752 = vmatpush1.msra.mxu0 %v750
        %753 = vmatprep.subr.mxu0 0.0
        %754 = vmatpush1.msra.mxu0 0.0
        %755 = vmatprep.subr.mxu0 0.0
        %756 = vmatpush1.msra.mxu0 0.0
        %757 = vmatprep.subr.mxu0 0.0
        %758 = vmatpush1.msra.mxu0 0.0
        %759 = vmatprep.subr.mxu0 0.0
        %760 = vmatpush1.msra.mxu0 0.0
        %761 = vmatprep.subr.mxu0 0.0
        %762 = vmatpush1.msra.mxu0 0.0
        %763 = vmatprep.subr.mxu0 0.0
        %764 = vmatpush1.msra.mxu0 0.0
        %765 = vmatprep.subr.mxu0 0.0
        %766 = vmatpush1.msra.mxu0 0.0
        %767 = vmatprep.subr.mxu0 0.0
        %768 = vmatpush1.msra.mxu0 0.0
        %769 = vmatprep.subr.mxu0 0.0
        %770 = vmatpush1.msra.mxu0 0.0
        %771 = vmatprep.subr.mxu0 0.0
        %772 = vmatpush1.msra.mxu0 0.0
        %773 = vmatprep.subr.mxu0 0.0
        %774 = vmatpush1.msra.mxu0 0.0
        %775 = vmatprep.subr.mxu0 0.0
        %776 = vmatpush1.msra.mxu0 0.0
        %777 = vmatprep.subr.mxu0 0.0
        %778 = vmatpush1.msra.mxu0 0.0
        %779 = vmatprep.subr.mxu0 0.0
        %780 = vmatpush1.msra.mxu0 0.0
        %781 = vmatprep.subr.mxu0 0.0
        %782 = vmatpush1.msra.mxu0 0.0
        %783 = vmatprep.subr.mxu0 0.0
        %784 = vmatpush1.msra.mxu0 0.0
        %785 = vmatprep.subr.mxu0 0.0
        %786 = vmatpush1.msra.mxu0 0.0
        %787 = vmatprep.subr.mxu0 0.0
        %788 = vmatpush1.msra.mxu0 0.0
        %789 = vmatprep.subr.mxu0 0.0
        %790 = vmatpush1.msra.mxu0 0.0
        %791 = vmatprep.subr.mxu0 0.0
        %792 = vmatpush1.msra.mxu0 0.0
        %793 = vmatprep.subr.mxu0 0.0
        %794 = vmatpush1.msra.mxu0 0.0
        %795 = vmatprep.subr.mxu0 0.0
        %796 = vmatpush1.msra.mxu0 0.0
        %797 = vmatprep.subr.mxu0 0.0
        %798 = vmatpush1.msra.mxu0 0.0
        %799 = vmatprep.subr.mxu0 0.0
        %800 = vmatpush1.msra.mxu0 0.0
        %801 = vmatprep.subr.mxu0 0.0
        %802 = vmatpush1.msra.mxu0 0.0
        %803 = vmatprep.subr.mxu0 0.0
        %804 = vmatpush1.msra.mxu0 0.0
        %805 = vmatprep.subr.mxu0 0.0
        %806 = vmatpush1.msra.mxu0 0.0
        %807 = vmatprep.subr.mxu0 0.0
        %808 = vmatpush1.msra.mxu0 0.0
        %809 = vmatprep.subr.mxu0 0.0
        %810 = vmatpush1.msra.mxu0 0.0
        %811 = vmatprep.subr.mxu0 0.0
        %812 = vmatpush1.msra.mxu0 0.0
        %813 = vmatprep.subr.mxu0 0.0
        %814 = vmatpush1.msra.mxu0 0.0
        %815 = vmatprep.mubr.f32.mxu0 0.0
        %816 = vmatmul.mubr.f32.gmra.mrb[0].mxu0 %v438
        %v817 = vpop.f32.mrb[0].mxu0
        %v818 = vadd.f32 0.0, %v817
        %v819 = vpop.f32.mrb[0].mxu0
        %820 = vmatprep.mubr.f32.mxu0 0.0
        %821 = vmatmul.mubr.f32.gmra.mrb[0].mxu0 %v441
        %v822 = vpop.f32.mrb[0].mxu0
        %v823 = vadd.f32 0.0, %v822
        %v824 = vpop.f32.mrb[0].mxu0
        %825 = vdwg.mxu0
        %v826 = vld [vmem:[%s3] sm:$0x1]
        %v828 = vlaneseq
        %v829 = vshrl.u32 %v828, 7
        %v830 = vsub.s32 0, %v829
        %v831 = vrot.slane %v826, %v830
        %vm833 = vcmask 654336
        %v835 = vsel %vm833, %v431, 0
        %v838 = vsel %vm833, %v432, 0
        %840 = vmatprep.subr.mxu0 0.0
        %841 = vmatpush1.msra.mxu0 %v510
        %842 = vmatprep.subr.mxu0 0.0
        %843 = vmatpush1.msra.mxu0 %v515
        %844 = vmatprep.subr.mxu0 0.0
        %845 = vmatpush1.msra.mxu0 %v587
        %846 = vmatprep.subr.mxu0 0.0
        %847 = vmatpush1.msra.mxu0 %v592
        %848 = vmatprep.subr.mxu0 0.0
        %849 = vmatpush1.msra.mxu0 %v664
        %850 = vmatprep.subr.mxu0 0.0
        %851 = vmatpush1.msra.mxu0 %v669
        %852 = vmatprep.subr.mxu0 0.0
        %853 = vmatpush1.msra.mxu0 %v741
        %854 = vmatprep.subr.mxu0 0.0
        %855 = vmatpush1.msra.mxu0 %v746
        %856 = vmatprep.subr.mxu0 0.0
        %857 = vmatpush1.msra.mxu0 %v818
        %858 = vmatprep.subr.mxu0 0.0
        %859 = vmatpush1.msra.mxu0 %v823
        %860 = vmatprep.subr.mxu0 0.0
        %861 = vmatpush1.msra.mxu0 0.0
        %862 = vmatprep.subr.mxu0 0.0
        %863 = vmatpush1.msra.mxu0 0.0
        %864 = vmatprep.subr.mxu0 0.0
        %865 = vmatpush1.msra.mxu0 0.0
        %866 = vmatprep.subr.mxu0 0.0
        %867 = vmatpush1.msra.mxu0 0.0
        %868 = vmatprep.subr.mxu0 0.0
        %869 = vmatpush1.msra.mxu0 0.0
        %870 = vmatprep.subr.mxu0 0.0
        %871 = vmatpush1.msra.mxu0 0.0
        %872 = vmatprep.subr.mxu0 0.0
        %873 = vmatpush1.msra.mxu0 0.0
        %874 = vmatprep.subr.mxu0 0.0
        %875 = vmatpush1.msra.mxu0 0.0
        %876 = vmatprep.subr.mxu0 0.0
        %877 = vmatpush1.msra.mxu0 0.0
        %878 = vmatprep.subr.mxu0 0.0
        %879 = vmatpush1.msra.mxu0 0.0
        %880 = vmatprep.subr.mxu0 0.0
        %881 = vmatpush1.msra.mxu0 0.0
        %882 = vmatprep.subr.mxu0 0.0
        %883 = vmatpush1.msra.mxu0 0.0
        %884 = vmatprep.subr.mxu0 0.0
        %885 = vmatpush1.msra.mxu0 0.0
        %886 = vmatprep.subr.mxu0 0.0
        %887 = vmatpush1.msra.mxu0 0.0
        %888 = vmatprep.subr.mxu0 0.0
        %889 = vmatpush1.msra.mxu0 0.0
        %890 = vmatprep.subr.mxu0 0.0
        %891 = vmatpush1.msra.mxu0 0.0
        %892 = vmatprep.subr.mxu0 0.0
        %893 = vmatpush1.msra.mxu0 0.0
        %894 = vmatprep.subr.mxu0 0.0
        %895 = vmatpush1.msra.mxu0 0.0
        %896 = vmatprep.subr.mxu0 0.0
        %897 = vmatpush1.msra.mxu0 0.0
        %898 = vmatprep.subr.mxu0 0.0
        %899 = vmatpush1.msra.mxu0 0.0
        %900 = vmatprep.subr.mxu0 0.0
        %901 = vmatpush1.msra.mxu0 0.0
        %902 = vmatprep.subr.mxu0 0.0
        %903 = vmatpush1.msra.mxu0 0.0
        %904 = vmatprep.mubr.f32.mxu0 0.0
        %905 = vmatmul.mubr.f32.gmra.mrb[0].mxu0 %v835
        %v906 = vpop.f32.mrb[0].mxu0
        %v907 = vadd.f32 %v831, %v906
        %v908 = vpop.f32.mrb[0].mxu0
        %909 = vmatprep.mubr.f32.mxu0 0.0
        %910 = vmatmul.mubr.f32.gmra.mrb[0].mxu0 %v838
        %v911 = vpop.f32.mrb[0].mxu0
        %v912 = vadd.f32 %v831, %v911
        %v913 = vpop.f32.mrb[0].mxu0
        %914 = vdwg.mxu0
        %v915 = vtanh.pop %v907
        %v916 = vtanh.pop %v912
        %v917 = vld [vmem:[%s4] sm:$0xff]
        %v918 = vld [vmem:[%s4 + $0x8] sm:$0xff]
        %v919 = vld [vmem:[%s4 + $0x10] sm:$0xff]
        %v920 = vld [vmem:[%s4 + $0x18] sm:$0xff]
        %vm921 = vcmask 261120
        %v923 = vsel %vm921, %v915, 0
        %v926 = vsel %vm921, %v916, 0
        %928 = vmatprep.subr.mxu0 0.0
        %929 = vmatpush1.msra.mxu0 %v917
        %930 = vmatprep.subr.mxu0 0.0
        %931 = vmatpush1.msra.mxu0 %v918
        %932 = vmatprep.subr.mxu0 0.0
        %933 = vmatpush1.msra.mxu0 %v919
        %934 = vmatprep.subr.mxu0 0.0
        %935 = vmatpush1.msra.mxu0 %v920
        %936 = vmatprep.subr.mxu0 0.0
        %937 = vmatpush1.msra.mxu0 0.0
        %938 = vmatprep.subr.mxu0 0.0
        %939 = vmatpush1.msra.mxu0 0.0
        %940 = vmatprep.subr.mxu0 0.0
        %941 = vmatpush1.msra.mxu0 0.0
        %942 = vmatprep.subr.mxu0 0.0
        %943 = vmatpush1.msra.mxu0 0.0
        %944 = vmatprep.subr.mxu0 0.0
        %945 = vmatpush1.msra.mxu0 0.0
        %946 = vmatprep.subr.mxu0 0.0
        %947 = vmatpush1.msra.mxu0 0.0
        %948 = vmatprep.subr.mxu0 0.0
        %949 = vmatpush1.msra.mxu0 0.0
        %950 = vmatprep.subr.mxu0 0.0
        %951 = vmatpush1.msra.mxu0 0.0
        %952 = vmatprep.subr.mxu0 0.0
        %953 = vmatpush1.msra.mxu0 0.0
        %954 = vmatprep.subr.mxu0 0.0
        %955 = vmatpush1.msra.mxu0 0.0
        %956 = vmatprep.subr.mxu0 0.0
        %957 = vmatpush1.msra.mxu0 0.0
        %958 = vmatprep.subr.mxu0 0.0
        %959 = vmatpush1.msra.mxu0 0.0
        %960 = vmatprep.subr.mxu0 0.0
        %961 = vmatpush1.msra.mxu0 0.0
        %962 = vmatprep.subr.mxu0 0.0
        %963 = vmatpush1.msra.mxu0 0.0
        %964 = vmatprep.subr.mxu0 0.0
        %965 = vmatpush1.msra.mxu0 0.0
        %966 = vmatprep.subr.mxu0 0.0
        %967 = vmatpush1.msra.mxu0 0.0
        %968 = vmatprep.subr.mxu0 0.0
        %969 = vmatpush1.msra.mxu0 0.0
        %970 = vmatprep.subr.mxu0 0.0
        %971 = vmatpush1.msra.mxu0 0.0
        %972 = vmatprep.subr.mxu0 0.0
        %973 = vmatpush1.msra.mxu0 0.0
        %974 = vmatprep.subr.mxu0 0.0
        %975 = vmatpush1.msra.mxu0 0.0
        %976 = vmatprep.subr.mxu0 0.0
        %977 = vmatpush1.msra.mxu0 0.0
        %978 = vmatprep.subr.mxu0 0.0
        %979 = vmatpush1.msra.mxu0 0.0
        %980 = vmatprep.subr.mxu0 0.0
        %981 = vmatpush1.msra.mxu0 0.0
        %982 = vmatprep.subr.mxu0 0.0
        %983 = vmatpush1.msra.mxu0 0.0
        %984 = vmatprep.subr.mxu0 0.0
        %985 = vmatpush1.msra.mxu0 0.0
        %986 = vmatprep.subr.mxu0 0.0
        %987 = vmatpush1.msra.mxu0 0.0
        %988 = vmatprep.subr.mxu0 0.0
        %989 = vmatpush1.msra.mxu0 0.0
        %990 = vmatprep.subr.mxu0 0.0
        %991 = vmatpush1.msra.mxu0 0.0
        %992 = vmatprep.mubr.f32.mxu0 0.0
        %993 = vmatmul.mubr.f32.gmra.mrb[0].mxu0 %v923
        %v994 = vpop.f32.mrb[0].mxu0
        %v995 = vadd.f32 0.0, %v994
        %v996 = vpop.f32.mrb[0].mxu0
        %997 = vmatprep.mubr.f32.mxu0 0.0
        %998 = vmatmul.mubr.f32.gmra.mrb[0].mxu0 %v926
        %v999 = vpop.f32.mrb[0].mxu0
        %v1000 = vadd.f32 0.0, %v999
        %v1001 = vpop.f32.mrb[0].mxu0
        %1002 = vdwg.mxu0
        %s1003 = scalar_lea.vmem %s4, 32
        %v1004 = vld [vmem:[%s1003] sm:$0xff]
        %v1005 = vld [vmem:[%s1003 + $0x8] sm:$0xff]
        %v1006 = vld [vmem:[%s1003 + $0x10] sm:$0xff]
        %v1007 = vld [vmem:[%s1003 + $0x18] sm:$0xff]
        %1008 = vmatprep.subr.mxu0 0.0
        %1009 = vmatpush1.msra.mxu0 %v1004
        %1010 = vmatprep.subr.mxu0 0.0
        %1011 = vmatpush1.msra.mxu0 %v1005
        %1012 = vmatprep.subr.mxu0 0.0
        %1013 = vmatpush1.msra.mxu0 %v1006
        %1014 = vmatprep.subr.mxu0 0.0
        %1015 = vmatpush1.msra.mxu0 %v1007
        %1016 = vmatprep.subr.mxu0 0.0
        %1017 = vmatpush1.msra.mxu0 0.0
        %1018 = vmatprep.subr.mxu0 0.0
        %1019 = vmatpush1.msra.mxu0 0.0
        %1020 = vmatprep.subr.mxu0 0.0
        %1021 = vmatpush1.msra.mxu0 0.0
        %1022 = vmatprep.subr.mxu0 0.0
        %1023 = vmatpush1.msra.mxu0 0.0
        %1024 = vmatprep.subr.mxu0 0.0
        %1025 = vmatpush1.msra.mxu0 0.0
        %1026 = vmatprep.subr.mxu0 0.0
        %1027 = vmatpush1.msra.mxu0 0.0
        %1028 = vmatprep.subr.mxu0 0.0
        %1029 = vmatpush1.msra.mxu0 0.0
        %1030 = vmatprep.subr.mxu0 0.0
        %1031 = vmatpush1.msra.mxu0 0.0
        %1032 = vmatprep.subr.mxu0 0.0
        %1033 = vmatpush1.msra.mxu0 0.0
        %1034 = vmatprep.subr.mxu0 0.0
        %1035 = vmatpush1.msra.mxu0 0.0
        %1036 = vmatprep.subr.mxu0 0.0
        %1037 = vmatpush1.msra.mxu0 0.0
        %1038 = vmatprep.subr.mxu0 0.0
        %1039 = vmatpush1.msra.mxu0 0.0
        %1040 = vmatprep.subr.mxu0 0.0
        %1041 = vmatpush1.msra.mxu0 0.0
        %1042 = vmatprep.subr.mxu0 0.0
        %1043 = vmatpush1.msra.mxu0 0.0
        %1044 = vmatprep.subr.mxu0 0.0
        %1045 = vmatpush1.msra.mxu0 0.0
        %1046 = vmatprep.subr.mxu0 0.0
        %1047 = vmatpush1.msra.mxu0 0.0
        %1048 = vmatprep.subr.mxu0 0.0
        %1049 = vmatpush1.msra.mxu0 0.0
        %1050 = vmatprep.subr.mxu0 0.0
        %1051 = vmatpush1.msra.mxu0 0.0
        %1052 = vmatprep.subr.mxu0 0.0
        %1053 = vmatpush1.msra.mxu0 0.0
        %1054 = vmatprep.subr.mxu0 0.0
        %1055 = vmatpush1.msra.mxu0 0.0
        %1056 = vmatprep.subr.mxu0 0.0
        %1057 = vmatpush1.msra.mxu0 0.0
        %1058 = vmatprep.subr.mxu0 0.0
        %1059 = vmatpush1.msra.mxu0 0.0
        %1060 = vmatprep.subr.mxu0 0.0
        %1061 = vmatpush1.msra.mxu0 0.0
        %1062 = vmatprep.subr.mxu0 0.0
        %1063 = vmatpush1.msra.mxu0 0.0
        %1064 = vmatprep.subr.mxu0 0.0
        %1065 = vmatpush1.msra.mxu0 0.0
        %1066 = vmatprep.subr.mxu0 0.0
        %1067 = vmatpush1.msra.mxu0 0.0
        %1068 = vmatprep.subr.mxu0 0.0
        %1069 = vmatpush1.msra.mxu0 0.0
        %1070 = vmatprep.subr.mxu0 0.0
        %1071 = vmatpush1.msra.mxu0 0.0
        %1072 = vmatprep.mubr.f32.mxu0 0.0
        %1073 = vmatmul.mubr.f32.gmra.mrb[0].mxu0 %v923
        %v1074 = vpop.f32.mrb[0].mxu0
        %v1075 = vadd.f32 0.0, %v1074
        %v1076 = vpop.f32.mrb[0].mxu0
        %1077 = vmatprep.mubr.f32.mxu0 0.0
        %1078 = vmatmul.mubr.f32.gmra.mrb[0].mxu0 %v926
        %v1079 = vpop.f32.mrb[0].mxu0
        %v1080 = vadd.f32 0.0, %v1079
        %v1081 = vpop.f32.mrb[0].mxu0
        %1082 = vdwg.mxu0
        %s1083 = scalar_lea.vmem %s4, 64
        %v1084 = vld [vmem:[%s1083] sm:$0xff]
        %v1085 = vld [vmem:[%s1083 + $0x8] sm:$0xff]
        %v1086 = vld [vmem:[%s1083 + $0x10] sm:$0xff]
        %v1087 = vld [vmem:[%s1083 + $0x18] sm:$0xff]
        %1088 = vmatprep.subr.mxu0 0.0
        %1089 = vmatpush1.msra.mxu0 %v1084
        %1090 = vmatprep.subr.mxu0 0.0
        %1091 = vmatpush1.msra.mxu0 %v1085
        %1092 = vmatprep.subr.mxu0 0.0
        %1093 = vmatpush1.msra.mxu0 %v1086
        %1094 = vmatprep.subr.mxu0 0.0
        %1095 = vmatpush1.msra.mxu0 %v1087
        %1096 = vmatprep.subr.mxu0 0.0
        %1097 = vmatpush1.msra.mxu0 0.0
        %1098 = vmatprep.subr.mxu0 0.0
        %1099 = vmatpush1.msra.mxu0 0.0
        %1100 = vmatprep.subr.mxu0 0.0
        %1101 = vmatpush1.msra.mxu0 0.0
        %1102 = vmatprep.subr.mxu0 0.0
        %1103 = vmatpush1.msra.mxu0 0.0
        %1104 = vmatprep.subr.mxu0 0.0
        %1105 = vmatpush1.msra.mxu0 0.0
        %1106 = vmatprep.subr.mxu0 0.0
        %1107 = vmatpush1.msra.mxu0 0.0
        %1108 = vmatprep.subr.mxu0 0.0
        %1109 = vmatpush1.msra.mxu0 0.0
        %1110 = vmatprep.subr.mxu0 0.0
        %1111 = vmatpush1.msra.mxu0 0.0
        %1112 = vmatprep.subr.mxu0 0.0
        %1113 = vmatpush1.msra.mxu0 0.0
        %1114 = vmatprep.subr.mxu0 0.0
        %1115 = vmatpush1.msra.mxu0 0.0
        %1116 = vmatprep.subr.mxu0 0.0
        %1117 = vmatpush1.msra.mxu0 0.0
        %1118 = vmatprep.subr.mxu0 0.0
        %1119 = vmatpush1.msra.mxu0 0.0
        %1120 = vmatprep.subr.mxu0 0.0
        %1121 = vmatpush1.msra.mxu0 0.0
        %1122 = vmatprep.subr.mxu0 0.0
        %1123 = vmatpush1.msra.mxu0 0.0
        %1124 = vmatprep.subr.mxu0 0.0
        %1125 = vmatpush1.msra.mxu0 0.0
        %1126 = vmatprep.subr.mxu0 0.0
        %1127 = vmatpush1.msra.mxu0 0.0
        %1128 = vmatprep.subr.mxu0 0.0
        %1129 = vmatpush1.msra.mxu0 0.0
        %1130 = vmatprep.subr.mxu0 0.0
        %1131 = vmatpush1.msra.mxu0 0.0
        %1132 = vmatprep.subr.mxu0 0.0
        %1133 = vmatpush1.msra.mxu0 0.0
        %1134 = vmatprep.subr.mxu0 0.0
        %1135 = vmatpush1.msra.mxu0 0.0
        %1136 = vmatprep.subr.mxu0 0.0
        %1137 = vmatpush1.msra.mxu0 0.0
        %1138 = vmatprep.subr.mxu0 0.0
        %1139 = vmatpush1.msra.mxu0 0.0
        %1140 = vmatprep.subr.mxu0 0.0
        %1141 = vmatpush1.msra.mxu0 0.0
        %1142 = vmatprep.subr.mxu0 0.0
        %1143 = vmatpush1.msra.mxu0 0.0
        %1144 = vmatprep.subr.mxu0 0.0
        %1145 = vmatpush1.msra.mxu0 0.0
        %1146 = vmatprep.subr.mxu0 0.0
        %1147 = vmatpush1.msra.mxu0 0.0
        %1148 = vmatprep.subr.mxu0 0.0
        %1149 = vmatpush1.msra.mxu0 0.0
        %1150 = vmatprep.subr.mxu0 0.0
        %1151 = vmatpush1.msra.mxu0 0.0
        %1152 = vmatprep.mubr.f32.mxu0 0.0
        %1153 = vmatmul.mubr.f32.gmra.mrb[0].mxu0 %v923
        %v1154 = vpop.f32.mrb[0].mxu0
        %v1155 = vadd.f32 0.0, %v1154
        %v1156 = vpop.f32.mrb[0].mxu0
        %1157 = vmatprep.mubr.f32.mxu0 0.0
        %1158 = vmatmul.mubr.f32.gmra.mrb[0].mxu0 %v926
        %v1159 = vpop.f32.mrb[0].mxu0
        %v1160 = vadd.f32 0.0, %v1159
        %v1161 = vpop.f32.mrb[0].mxu0
        %1162 = vdwg.mxu0
        %s1163 = scalar_lea.vmem %s4, 96
        %v1164 = vld [vmem:[%s1163] sm:$0xff]
        %v1165 = vld [vmem:[%s1163 + $0x8] sm:$0xff]
        %v1166 = vld [vmem:[%s1163 + $0x10] sm:$0xff]
        %v1167 = vld [vmem:[%s1163 + $0x18] sm:$0xff]
        %1168 = vmatprep.subr.mxu0 0.0
        %1169 = vmatpush1.msra.mxu0 %v1164
        %1170 = vmatprep.subr.mxu0 0.0
        %1171 = vmatpush1.msra.mxu0 %v1165
        %1172 = vmatprep.subr.mxu0 0.0
        %1173 = vmatpush1.msra.mxu0 %v1166
        %1174 = vmatprep.subr.mxu0 0.0
        %1175 = vmatpush1.msra.mxu0 %v1167
        %1176 = vmatprep.subr.mxu0 0.0
        %1177 = vmatpush1.msra.mxu0 0.0
        %1178 = vmatprep.subr.mxu0 0.0
        %1179 = vmatpush1.msra.mxu0 0.0
        %1180 = vmatprep.subr.mxu0 0.0
        %1181 = vmatpush1.msra.mxu0 0.0
        %1182 = vmatprep.subr.mxu0 0.0
        %1183 = vmatpush1.msra.mxu0 0.0
        %1184 = vmatprep.subr.mxu0 0.0
        %1185 = vmatpush1.msra.mxu0 0.0
        %1186 = vmatprep.subr.mxu0 0.0
        %1187 = vmatpush1.msra.mxu0 0.0
        %1188 = vmatprep.subr.mxu0 0.0
        %1189 = vmatpush1.msra.mxu0 0.0
        %1190 = vmatprep.subr.mxu0 0.0
        %1191 = vmatpush1.msra.mxu0 0.0
        %1192 = vmatprep.subr.mxu0 0.0
        %1193 = vmatpush1.msra.mxu0 0.0
        %1194 = vmatprep.subr.mxu0 0.0
        %1195 = vmatpush1.msra.mxu0 0.0
        %1196 = vmatprep.subr.mxu0 0.0
        %1197 = vmatpush1.msra.mxu0 0.0
        %1198 = vmatprep.subr.mxu0 0.0
        %1199 = vmatpush1.msra.mxu0 0.0
        %1200 = vmatprep.subr.mxu0 0.0
        %1201 = vmatpush1.msra.mxu0 0.0
        %1202 = vmatprep.subr.mxu0 0.0
        %1203 = vmatpush1.msra.mxu0 0.0
        %1204 = vmatprep.subr.mxu0 0.0
        %1205 = vmatpush1.msra.mxu0 0.0
        %1206 = vmatprep.subr.mxu0 0.0
        %1207 = vmatpush1.msra.mxu0 0.0
        %1208 = vmatprep.subr.mxu0 0.0
        %1209 = vmatpush1.msra.mxu0 0.0
        %1210 = vmatprep.subr.mxu0 0.0
        %1211 = vmatpush1.msra.mxu0 0.0
        %1212 = vmatprep.subr.mxu0 0.0
        %1213 = vmatpush1.msra.mxu0 0.0
        %1214 = vmatprep.subr.mxu0 0.0
        %1215 = vmatpush1.msra.mxu0 0.0
        %1216 = vmatprep.subr.mxu0 0.0
        %1217 = vmatpush1.msra.mxu0 0.0
        %1218 = vmatprep.subr.mxu0 0.0
        %1219 = vmatpush1.msra.mxu0 0.0
        %1220 = vmatprep.subr.mxu0 0.0
        %1221 = vmatpush1.msra.mxu0 0.0
        %1222 = vmatprep.subr.mxu0 0.0
        %1223 = vmatpush1.msra.mxu0 0.0
        %1224 = vmatprep.subr.mxu0 0.0
        %1225 = vmatpush1.msra.mxu0 0.0
        %1226 = vmatprep.subr.mxu0 0.0
        %1227 = vmatpush1.msra.mxu0 0.0
        %1228 = vmatprep.subr.mxu0 0.0
        %1229 = vmatpush1.msra.mxu0 0.0
        %1230 = vmatprep.subr.mxu0 0.0
        %1231 = vmatpush1.msra.mxu0 0.0
        %1232 = vmatprep.mubr.f32.mxu0 0.0
        %1233 = vmatmul.mubr.f32.gmra.mrb[0].mxu0 %v923
        %v1234 = vpop.f32.mrb[0].mxu0
        %v1235 = vadd.f32 0.0, %v1234
        %v1236 = vpop.f32.mrb[0].mxu0
        %1237 = vmatprep.mubr.f32.mxu0 0.0
        %1238 = vmatmul.mubr.f32.gmra.mrb[0].mxu0 %v926
        %v1239 = vpop.f32.mrb[0].mxu0
        %v1240 = vadd.f32 0.0, %v1239
        %v1241 = vpop.f32.mrb[0].mxu0
        %1242 = vdwg.mxu0
        %s1243 = scalar_lea.vmem %s4, 128
        %v1244 = vld [vmem:[%s1243] sm:$0xff]
        %v1245 = vld [vmem:[%s1243 + $0x8] sm:$0xff]
        %v1246 = vld [vmem:[%s1243 + $0x10] sm:$0xff]
        %v1247 = vld [vmem:[%s1243 + $0x18] sm:$0xff]
        %1248 = vmatprep.subr.mxu0 0.0
        %1249 = vmatpush1.msra.mxu0 %v1244
        %1250 = vmatprep.subr.mxu0 0.0
        %1251 = vmatpush1.msra.mxu0 %v1245
        %1252 = vmatprep.subr.mxu0 0.0
        %1253 = vmatpush1.msra.mxu0 %v1246
        %1254 = vmatprep.subr.mxu0 0.0
        %1255 = vmatpush1.msra.mxu0 %v1247
        %1256 = vmatprep.subr.mxu0 0.0
        %1257 = vmatpush1.msra.mxu0 0.0
        %1258 = vmatprep.subr.mxu0 0.0
        %1259 = vmatpush1.msra.mxu0 0.0
        %1260 = vmatprep.subr.mxu0 0.0
        %1261 = vmatpush1.msra.mxu0 0.0
        %1262 = vmatprep.subr.mxu0 0.0
        %1263 = vmatpush1.msra.mxu0 0.0
        %1264 = vmatprep.subr.mxu0 0.0
        %1265 = vmatpush1.msra.mxu0 0.0
        %1266 = vmatprep.subr.mxu0 0.0
        %1267 = vmatpush1.msra.mxu0 0.0
        %1268 = vmatprep.subr.mxu0 0.0
        %1269 = vmatpush1.msra.mxu0 0.0
        %1270 = vmatprep.subr.mxu0 0.0
        %1271 = vmatpush1.msra.mxu0 0.0
        %1272 = vmatprep.subr.mxu0 0.0
        %1273 = vmatpush1.msra.mxu0 0.0
        %1274 = vmatprep.subr.mxu0 0.0
        %1275 = vmatpush1.msra.mxu0 0.0
        %1276 = vmatprep.subr.mxu0 0.0
        %1277 = vmatpush1.msra.mxu0 0.0
        %1278 = vmatprep.subr.mxu0 0.0
        %1279 = vmatpush1.msra.mxu0 0.0
        %1280 = vmatprep.subr.mxu0 0.0
        %1281 = vmatpush1.msra.mxu0 0.0
        %1282 = vmatprep.subr.mxu0 0.0
        %1283 = vmatpush1.msra.mxu0 0.0
        %1284 = vmatprep.subr.mxu0 0.0
        %1285 = vmatpush1.msra.mxu0 0.0
        %1286 = vmatprep.subr.mxu0 0.0
        %1287 = vmatpush1.msra.mxu0 0.0
        %1288 = vmatprep.subr.mxu0 0.0
        %1289 = vmatpush1.msra.mxu0 0.0
        %1290 = vmatprep.subr.mxu0 0.0
        %1291 = vmatpush1.msra.mxu0 0.0
        %1292 = vmatprep.subr.mxu0 0.0
        %1293 = vmatpush1.msra.mxu0 0.0
        %1294 = vmatprep.subr.mxu0 0.0
        %1295 = vmatpush1.msra.mxu0 0.0
        %1296 = vmatprep.subr.mxu0 0.0
        %1297 = vmatpush1.msra.mxu0 0.0
        %1298 = vmatprep.subr.mxu0 0.0
        %1299 = vmatpush1.msra.mxu0 0.0
        %1300 = vmatprep.subr.mxu0 0.0
        %1301 = vmatpush1.msra.mxu0 0.0
        %1302 = vmatprep.subr.mxu0 0.0
        %1303 = vmatpush1.msra.mxu0 0.0
        %1304 = vmatprep.subr.mxu0 0.0
        %1305 = vmatpush1.msra.mxu0 0.0
        %1306 = vmatprep.subr.mxu0 0.0
        %1307 = vmatpush1.msra.mxu0 0.0
        %1308 = vmatprep.subr.mxu0 0.0
        %1309 = vmatpush1.msra.mxu0 0.0
        %1310 = vmatprep.subr.mxu0 0.0
        %1311 = vmatpush1.msra.mxu0 0.0
        %1312 = vmatprep.mubr.f32.mxu0 0.0
        %1313 = vmatmul.mubr.f32.gmra.mrb[0].mxu0 %v923
        %v1314 = vpop.f32.mrb[0].mxu0
        %v1315 = vadd.f32 0.0, %v1314
        %v1316 = vpop.f32.mrb[0].mxu0
        %1317 = vmatprep.mubr.f32.mxu0 0.0
        %1318 = vmatmul.mubr.f32.gmra.mrb[0].mxu0 %v926
        %v1319 = vpop.f32.mrb[0].mxu0
        %v1320 = vadd.f32 0.0, %v1319
        %v1321 = vpop.f32.mrb[0].mxu0
        %1322 = vdwg.mxu0
        %v1323 = vld [vmem:[%s5] sm:$0x1]
        %v1325 = vlaneseq
        %v1326 = vshrl.u32 %v1325, 7
        %v1327 = vsub.s32 0, %v1326
        %v1328 = vrot.slane %v1323, %v1327
        %1330 = vmatprep.subr.mxu0 0.0
        %1331 = vmatpush1.msra.mxu0 %v995
        %1332 = vmatprep.subr.mxu0 0.0
        %1333 = vmatpush1.msra.mxu0 %v1000
        %1334 = vmatprep.subr.mxu0 0.0
        %1335 = vmatpush1.msra.mxu0 %v1075
        %1336 = vmatprep.subr.mxu0 0.0
        %1337 = vmatpush1.msra.mxu0 %v1080
        %1338 = vmatprep.subr.mxu0 0.0
        %1339 = vmatpush1.msra.mxu0 %v1155
        %1340 = vmatprep.subr.mxu0 0.0
        %1341 = vmatpush1.msra.mxu0 %v1160
        %1342 = vmatprep.subr.mxu0 0.0
        %1343 = vmatpush1.msra.mxu0 %v1235
        %1344 = vmatprep.subr.mxu0 0.0
        %1345 = vmatpush1.msra.mxu0 %v1240
        %1346 = vmatprep.subr.mxu0 0.0
        %1347 = vmatpush1.msra.mxu0 %v1315
        %1348 = vmatprep.subr.mxu0 0.0
        %1349 = vmatpush1.msra.mxu0 %v1320
        %1350 = vmatprep.subr.mxu0 0.0
        %1351 = vmatpush1.msra.mxu0 0.0
        %1352 = vmatprep.subr.mxu0 0.0
        %1353 = vmatpush1.msra.mxu0 0.0
        %1354 = vmatprep.subr.mxu0 0.0
        %1355 = vmatpush1.msra.mxu0 0.0
        %1356 = vmatprep.subr.mxu0 0.0
        %1357 = vmatpush1.msra.mxu0 0.0
        %1358 = vmatprep.subr.mxu0 0.0
        %1359 = vmatpush1.msra.mxu0 0.0
        %1360 = vmatprep.subr.mxu0 0.0
        %1361 = vmatpush1.msra.mxu0 0.0
        %1362 = vmatprep.subr.mxu0 0.0
        %1363 = vmatpush1.msra.mxu0 0.0
        %1364 = vmatprep.subr.mxu0 0.0
        %1365 = vmatpush1.msra.mxu0 0.0
        %1366 = vmatprep.subr.mxu0 0.0
        %1367 = vmatpush1.msra.mxu0 0.0
        %1368 = vmatprep.subr.mxu0 0.0
        %1369 = vmatpush1.msra.mxu0 0.0
        %1370 = vmatprep.subr.mxu0 0.0
        %1371 = vmatpush1.msra.mxu0 0.0
        %1372 = vmatprep.subr.mxu0 0.0
        %1373 = vmatpush1.msra.mxu0 0.0
        %1374 = vmatprep.subr.mxu0 0.0
        %1375 = vmatpush1.msra.mxu0 0.0
        %1376 = vmatprep.subr.mxu0 0.0
        %1377 = vmatpush1.msra.mxu0 0.0
        %1378 = vmatprep.subr.mxu0 0.0
        %1379 = vmatpush1.msra.mxu0 0.0
        %1380 = vmatprep.subr.mxu0 0.0
        %1381 = vmatpush1.msra.mxu0 0.0
        %1382 = vmatprep.subr.mxu0 0.0
        %1383 = vmatpush1.msra.mxu0 0.0
        %1384 = vmatprep.subr.mxu0 0.0
        %1385 = vmatpush1.msra.mxu0 0.0
        %1386 = vmatprep.subr.mxu0 0.0
        %1387 = vmatpush1.msra.mxu0 0.0
        %1388 = vmatprep.subr.mxu0 0.0
        %1389 = vmatpush1.msra.mxu0 0.0
        %1390 = vmatprep.subr.mxu0 0.0
        %1391 = vmatpush1.msra.mxu0 0.0
        %1392 = vmatprep.subr.mxu0 0.0
        %1393 = vmatpush1.msra.mxu0 0.0
        %1394 = vmatprep.mubr.f32.mxu0 0.0
        %1395 = vmatmul.mubr.f32.gmra.mrb[0].mxu0 %v835
        %v1396 = vpop.f32.mrb[0].mxu0
        %v1397 = vadd.f32 %v1328, %v1396
        %v1398 = vpop.f32.mrb[0].mxu0
        %1399 = vmatprep.mubr.f32.mxu0 0.0
        %1400 = vmatmul.mubr.f32.gmra.mrb[0].mxu0 %v838
        %v1401 = vpop.f32.mrb[0].mxu0
        %v1402 = vadd.f32 %v1328, %v1401
        %v1403 = vpop.f32.mrb[0].mxu0
        %1404 = vdwg.mxu0
        %v1405 = vtanh.pop %v1397
        %v1406 = vtanh.pop %v1402
        %v1407 = vld [vmem:[%s6] sm:$0xff]
        %v1408 = vld [vmem:[%s6 + $0x8] sm:$0xff]
        %v1409 = vld [vmem:[%s7] sm:$0xff]
        %1410 = vmatprep.subr.mxu0 0.0
        %1411 = vmatpush1.msra.mxu0 %v1409
        %1412 = vmatprep.subr.mxu0 0.0
        %1413 = vmatpush1.msra.mxu0 0.0
        %1414 = vmatprep.subr.mxu0 0.0
        %1415 = vmatpush1.msra.mxu0 0.0
        %1416 = vmatprep.subr.mxu0 0.0
        %1417 = vmatpush1.msra.mxu0 0.0
        %1418 = vmatprep.subr.mxu0 0.0
        %1419 = vmatpush1.msra.mxu0 0.0
        %1420 = vmatprep.subr.mxu0 0.0
        %1421 = vmatpush1.msra.mxu0 0.0
        %1422 = vmatprep.subr.mxu0 0.0
        %1423 = vmatpush1.msra.mxu0 0.0
        %1424 = vmatprep.subr.mxu0 0.0
        %1425 = vmatpush1.msra.mxu0 0.0
        %1426 = vmatprep.subr.mxu0 0.0
        %1427 = vmatpush1.msra.mxu0 0.0
        %1428 = vmatprep.subr.mxu0 0.0
        %1429 = vmatpush1.msra.mxu0 0.0
        %1430 = vmatprep.subr.mxu0 0.0
        %1431 = vmatpush1.msra.mxu0 0.0
        %1432 = vmatprep.subr.mxu0 0.0
        %1433 = vmatpush1.msra.mxu0 0.0
        %1434 = vmatprep.subr.mxu0 0.0
        %1435 = vmatpush1.msra.mxu0 0.0
        %1436 = vmatprep.subr.mxu0 0.0
        %1437 = vmatpush1.msra.mxu0 0.0
        %1438 = vmatprep.subr.mxu0 0.0
        %1439 = vmatpush1.msra.mxu0 0.0
        %1440 = vmatprep.subr.mxu0 0.0
        %1441 = vmatpush1.msra.mxu0 0.0
        %1442 = vmatprep.subr.mxu0 0.0
        %1443 = vmatpush1.msra.mxu0 0.0
        %1444 = vmatprep.subr.mxu0 0.0
        %1445 = vmatpush1.msra.mxu0 0.0
        %1446 = vmatprep.subr.mxu0 0.0
        %1447 = vmatpush1.msra.mxu0 0.0
        %1448 = vmatprep.subr.mxu0 0.0
        %1449 = vmatpush1.msra.mxu0 0.0
        %1450 = vmatprep.subr.mxu0 0.0
        %1451 = vmatpush1.msra.mxu0 0.0
        %1452 = vmatprep.subr.mxu0 0.0
        %1453 = vmatpush1.msra.mxu0 0.0
        %1454 = vmatprep.subr.mxu0 0.0
        %1455 = vmatpush1.msra.mxu0 0.0
        %1456 = vmatprep.subr.mxu0 0.0
        %1457 = vmatpush1.msra.mxu0 0.0
        %1458 = vmatprep.subr.mxu0 0.0
        %1459 = vmatpush1.msra.mxu0 0.0
        %1460 = vmatprep.subr.mxu0 0.0
        %1461 = vmatpush1.msra.mxu0 0.0
        %1462 = vmatprep.subr.mxu0 0.0
        %1463 = vmatpush1.msra.mxu0 0.0
        %1464 = vmatprep.subr.mxu0 0.0
        %1465 = vmatpush1.msra.mxu0 0.0
        %1466 = vmatprep.subr.mxu0 0.0
        %1467 = vmatpush1.msra.mxu0 0.0
        %1468 = vmatprep.subr.mxu0 0.0
        %1469 = vmatpush1.msra.mxu0 0.0
        %1470 = vmatprep.subr.mxu0 0.0
        %1471 = vmatpush1.msra.mxu0 0.0
        %1472 = vmatprep.subr.mxu0 0.0
        %1473 = vmatpush1.msra.mxu0 0.0
        %1474 = vmatprep.mubr.f32.mxu0 0.0
        %1475 = vmatmul.mubr.f32.gmra.mrb[0].mxu0 %v438
        %v1476 = vpop.f32.mrb[0].mxu0
        %v1477 = vadd.f32 0.0, %v1476
        %v1478 = vpop.f32.mrb[0].mxu0
        %1479 = vmatprep.mubr.f32.mxu0 0.0
        %1480 = vmatmul.mubr.f32.gmra.mrb[0].mxu0 %v441
        %v1481 = vpop.f32.mrb[0].mxu0
        %v1482 = vadd.f32 0.0, %v1481
        %v1483 = vpop.f32.mrb[0].mxu0
        %1484 = vdwg.mxu0
        %vm1485 = vcmask 130048
        %v1487 = vsel %vm1485, %v1405, 0
        %v1490 = vsel %vm1485, %v1406, 0
        %1492 = vmatprep.subr.mxu0 0.0
        %1493 = vmatpush1.msra.mxu0 %v1407
        %1494 = vmatprep.subr.mxu0 0.0
        %1495 = vmatpush1.msra.mxu0 %v1408
        %1496 = vmatprep.subr.mxu0 0.0
        %1497 = vmatpush1.msra.mxu0 0.0
        %1498 = vmatprep.subr.mxu0 0.0
        %1499 = vmatpush1.msra.mxu0 0.0
        %1500 = vmatprep.subr.mxu0 0.0
        %1501 = vmatpush1.msra.mxu0 0.0
        %1502 = vmatprep.subr.mxu0 0.0
        %1503 = vmatpush1.msra.mxu0 0.0
        %1504 = vmatprep.subr.mxu0 0.0
        %1505 = vmatpush1.msra.mxu0 0.0
        %1506 = vmatprep.subr.mxu0 0.0
        %1507 = vmatpush1.msra.mxu0 0.0
        %1508 = vmatprep.subr.mxu0 0.0
        %1509 = vmatpush1.msra.mxu0 0.0
        %1510 = vmatprep.subr.mxu0 0.0
        %1511 = vmatpush1.msra.mxu0 0.0
        %1512 = vmatprep.subr.mxu0 0.0
        %1513 = vmatpush1.msra.mxu0 0.0
        %1514 = vmatprep.subr.mxu0 0.0
        %1515 = vmatpush1.msra.mxu0 0.0
        %1516 = vmatprep.subr.mxu0 0.0
        %1517 = vmatpush1.msra.mxu0 0.0
        %1518 = vmatprep.subr.mxu0 0.0
        %1519 = vmatpush1.msra.mxu0 0.0
        %1520 = vmatprep.subr.mxu0 0.0
        %1521 = vmatpush1.msra.mxu0 0.0
        %1522 = vmatprep.subr.mxu0 0.0
        %1523 = vmatpush1.msra.mxu0 0.0
        %1524 = vmatprep.subr.mxu0 0.0
        %1525 = vmatpush1.msra.mxu0 0.0
        %1526 = vmatprep.subr.mxu0 0.0
        %1527 = vmatpush1.msra.mxu0 0.0
        %1528 = vmatprep.subr.mxu0 0.0
        %1529 = vmatpush1.msra.mxu0 0.0
        %1530 = vmatprep.subr.mxu0 0.0
        %1531 = vmatpush1.msra.mxu0 0.0
        %1532 = vmatprep.subr.mxu0 0.0
        %1533 = vmatpush1.msra.mxu0 0.0
        %1534 = vmatprep.subr.mxu0 0.0
        %1535 = vmatpush1.msra.mxu0 0.0
        %1536 = vmatprep.subr.mxu0 0.0
        %1537 = vmatpush1.msra.mxu0 0.0
        %1538 = vmatprep.subr.mxu0 0.0
        %1539 = vmatpush1.msra.mxu0 0.0
        %1540 = vmatprep.subr.mxu0 0.0
        %1541 = vmatpush1.msra.mxu0 0.0
        %1542 = vmatprep.subr.mxu0 0.0
        %1543 = vmatpush1.msra.mxu0 0.0
        %1544 = vmatprep.subr.mxu0 0.0
        %1545 = vmatpush1.msra.mxu0 0.0
        %1546 = vmatprep.subr.mxu0 0.0
        %1547 = vmatpush1.msra.mxu0 0.0
        %1548 = vmatprep.subr.mxu0 0.0
        %1549 = vmatpush1.msra.mxu0 0.0
        %1550 = vmatprep.subr.mxu0 0.0
        %1551 = vmatpush1.msra.mxu0 0.0
        %1552 = vmatprep.subr.mxu0 0.0
        %1553 = vmatpush1.msra.mxu0 0.0
        %1554 = vmatprep.subr.mxu0 0.0
        %1555 = vmatpush1.msra.mxu0 0.0
        %1556 = vmatprep.mubr.f32.mxu0 0.0
        %1557 = vmatmul.mubr.f32.gmra.mrb[0].mxu0 %v1487
        %v1558 = vpop.f32.mrb[0].mxu0
        %v1559 = vadd.f32 %v1477, %v1558
        %v1560 = vpop.f32.mrb[0].mxu0
        %1561 = vmatprep.mubr.f32.mxu0 0.0
        %1562 = vmatmul.mubr.f32.gmra.mrb[0].mxu0 %v1490
        %v1563 = vpop.f32.mrb[0].mxu0
        %v1564 = vadd.f32 %v1482, %v1563
        %v1565 = vpop.f32.mrb[0].mxu0
        %1566 = vdwg.mxu0
        %v1567 = vld [vmem:[%s8] sm:$0x1]
        %v1569 = vlaneseq
        %v1570 = vshrl.u32 %v1569, 7
        %v1571 = vsub.s32 0, %v1570
        %v1572 = vrot.slane %v1567, %v1571
        %v1574 = vadd.f32 %v1559, %v1572
        %v1575 = vadd.f32 %v1564, %v1572
        %v1576 = vxor.u32 %v1574, 2147483648
        %v1577 = vxor.u32 %v1575, 2147483648
        %v1578 = vmul.f32 %v1576, 1.442695
        %v1579 = vpow.pop %v1578
        %v1580 = vmul.f32 %v1577, 1.442695
        %v1581 = vpow.pop %v1580
        %v1582 = vadd.f32 %v1579, 1.0
        %v1583 = vadd.f32 %v1581, 1.0
        %v1584 = vrcp.pop %v1582
        %v1585 = vmul.f32 1.0, %v1584
        %v1586 = vrcp.pop %v1583
        %v1587 = vmul.f32 1.0, %v1586
        %v1588 = vld [vmem:[%s9] sm:$0xff]
        %v1589 = vld [vmem:[%s9 + $0x8] sm:$0xff]
        %v1590 = vld [vmem:[%s10] sm:$0xff]
        %1591 = vmatprep.subr.mxu0 0.0
        %1592 = vmatpush1.msra.mxu0 %v1590
        %1593 = vmatprep.subr.mxu0 0.0
        %1594 = vmatpush1.msra.mxu0 0.0
        %1595 = vmatprep.subr.mxu0 0.0
        %1596 = vmatpush1.msra.mxu0 0.0
        %1597 = vmatprep.subr.mxu0 0.0
        %1598 = vmatpush1.msra.mxu0 0.0
        %1599 = vmatprep.subr.mxu0 0.0
        %1600 = vmatpush1.msra.mxu0 0.0
        %1601 = vmatprep.subr.mxu0 0.0
        %1602 = vmatpush1.msra.mxu0 0.0
        %1603 = vmatprep.subr.mxu0 0.0
        %1604 = vmatpush1.msra.mxu0 0.0
        %1605 = vmatprep.subr.mxu0 0.0
        %1606 = vmatpush1.msra.mxu0 0.0
        %1607 = vmatprep.subr.mxu0 0.0
        %1608 = vmatpush1.msra.mxu0 0.0
        %1609 = vmatprep.subr.mxu0 0.0
        %1610 = vmatpush1.msra.mxu0 0.0
        %1611 = vmatprep.subr.mxu0 0.0
        %1612 = vmatpush1.msra.mxu0 0.0
        %1613 = vmatprep.subr.mxu0 0.0
        %1614 = vmatpush1.msra.mxu0 0.0
        %1615 = vmatprep.subr.mxu0 0.0
        %1616 = vmatpush1.msra.mxu0 0.0
        %1617 = vmatprep.subr.mxu0 0.0
        %1618 = vmatpush1.msra.mxu0 0.0
        %1619 = vmatprep.subr.mxu0 0.0
        %1620 = vmatpush1.msra.mxu0 0.0
        %1621 = vmatprep.subr.mxu0 0.0
        %1622 = vmatpush1.msra.mxu0 0.0
        %1623 = vmatprep.subr.mxu0 0.0
        %1624 = vmatpush1.msra.mxu0 0.0
        %1625 = vmatprep.subr.mxu0 0.0
        %1626 = vmatpush1.msra.mxu0 0.0
        %1627 = vmatprep.subr.mxu0 0.0
        %1628 = vmatpush1.msra.mxu0 0.0
        %1629 = vmatprep.subr.mxu0 0.0
        %1630 = vmatpush1.msra.mxu0 0.0
        %1631 = vmatprep.subr.mxu0 0.0
        %1632 = vmatpush1.msra.mxu0 0.0
        %1633 = vmatprep.subr.mxu0 0.0
        %1634 = vmatpush1.msra.mxu0 0.0
        %1635 = vmatprep.subr.mxu0 0.0
        %1636 = vmatpush1.msra.mxu0 0.0
        %1637 = vmatprep.subr.mxu0 0.0
        %1638 = vmatpush1.msra.mxu0 0.0
        %1639 = vmatprep.subr.mxu0 0.0
        %1640 = vmatpush1.msra.mxu0 0.0
        %1641 = vmatprep.subr.mxu0 0.0
        %1642 = vmatpush1.msra.mxu0 0.0
        %1643 = vmatprep.subr.mxu0 0.0
        %1644 = vmatpush1.msra.mxu0 0.0
        %1645 = vmatprep.subr.mxu0 0.0
        %1646 = vmatpush1.msra.mxu0 0.0
        %1647 = vmatprep.subr.mxu0 0.0
        %1648 = vmatpush1.msra.mxu0 0.0
        %1649 = vmatprep.subr.mxu0 0.0
        %1650 = vmatpush1.msra.mxu0 0.0
        %1651 = vmatprep.subr.mxu0 0.0
        %1652 = vmatpush1.msra.mxu0 0.0
        %1653 = vmatprep.subr.mxu0 0.0
        %1654 = vmatpush1.msra.mxu0 0.0
        %1655 = vmatprep.mubr.f32.mxu0 0.0
        %1656 = vmatmul.mubr.f32.gmra.mrb[0].mxu0 %v438
        %v1657 = vpop.f32.mrb[0].mxu0
        %v1658 = vadd.f32 0.0, %v1657
        %v1659 = vpop.f32.mrb[0].mxu0
        %1660 = vmatprep.mubr.f32.mxu0 0.0
        %1661 = vmatmul.mubr.f32.gmra.mrb[0].mxu0 %v441
        %v1662 = vpop.f32.mrb[0].mxu0
        %v1663 = vadd.f32 0.0, %v1662
        %v1664 = vpop.f32.mrb[0].mxu0
        %1665 = vdwg.mxu0
        %1666 = vmatprep.subr.mxu0 0.0
        %1667 = vmatpush1.msra.mxu0 %v1588
        %1668 = vmatprep.subr.mxu0 0.0
        %1669 = vmatpush1.msra.mxu0 %v1589
        %1670 = vmatprep.subr.mxu0 0.0
        %1671 = vmatpush1.msra.mxu0 0.0
        %1672 = vmatprep.subr.mxu0 0.0
        %1673 = vmatpush1.msra.mxu0 0.0
        %1674 = vmatprep.subr.mxu0 0.0
        %1675 = vmatpush1.msra.mxu0 0.0
        %1676 = vmatprep.subr.mxu0 0.0
        %1677 = vmatpush1.msra.mxu0 0.0
        %1678 = vmatprep.subr.mxu0 0.0
        %1679 = vmatpush1.msra.mxu0 0.0
        %1680 = vmatprep.subr.mxu0 0.0
        %1681 = vmatpush1.msra.mxu0 0.0
        %1682 = vmatprep.subr.mxu0 0.0
        %1683 = vmatpush1.msra.mxu0 0.0
        %1684 = vmatprep.subr.mxu0 0.0
        %1685 = vmatpush1.msra.mxu0 0.0
        %1686 = vmatprep.subr.mxu0 0.0
        %1687 = vmatpush1.msra.mxu0 0.0
        %1688 = vmatprep.subr.mxu0 0.0
        %1689 = vmatpush1.msra.mxu0 0.0
        %1690 = vmatprep.subr.mxu0 0.0
        %1691 = vmatpush1.msra.mxu0 0.0
        %1692 = vmatprep.subr.mxu0 0.0
        %1693 = vmatpush1.msra.mxu0 0.0
        %1694 = vmatprep.subr.mxu0 0.0
        %1695 = vmatpush1.msra.mxu0 0.0
        %1696 = vmatprep.subr.mxu0 0.0
        %1697 = vmatpush1.msra.mxu0 0.0
        %1698 = vmatprep.subr.mxu0 0.0
        %1699 = vmatpush1.msra.mxu0 0.0
        %1700 = vmatprep.subr.mxu0 0.0
        %1701 = vmatpush1.msra.mxu0 0.0
        %1702 = vmatprep.subr.mxu0 0.0
        %1703 = vmatpush1.msra.mxu0 0.0
        %1704 = vmatprep.subr.mxu0 0.0
        %1705 = vmatpush1.msra.mxu0 0.0
        %1706 = vmatprep.subr.mxu0 0.0
        %1707 = vmatpush1.msra.mxu0 0.0
        %1708 = vmatprep.subr.mxu0 0.0
        %1709 = vmatpush1.msra.mxu0 0.0
        %1710 = vmatprep.subr.mxu0 0.0
        %1711 = vmatpush1.msra.mxu0 0.0
        %1712 = vmatprep.subr.mxu0 0.0
        %1713 = vmatpush1.msra.mxu0 0.0
        %1714 = vmatprep.subr.mxu0 0.0
        %1715 = vmatpush1.msra.mxu0 0.0
        %1716 = vmatprep.subr.mxu0 0.0
        %1717 = vmatpush1.msra.mxu0 0.0
        %1718 = vmatprep.subr.mxu0 0.0
        %1719 = vmatpush1.msra.mxu0 0.0
        %1720 = vmatprep.subr.mxu0 0.0
        %1721 = vmatpush1.msra.mxu0 0.0
        %1722 = vmatprep.subr.mxu0 0.0
        %1723 = vmatpush1.msra.mxu0 0.0
        %1724 = vmatprep.subr.mxu0 0.0
        %1725 = vmatpush1.msra.mxu0 0.0
        %1726 = vmatprep.subr.mxu0 0.0
        %1727 = vmatpush1.msra.mxu0 0.0
        %1728 = vmatprep.subr.mxu0 0.0
        %1729 = vmatpush1.msra.mxu0 0.0
        %1730 = vmatprep.mubr.f32.mxu0 0.0
        %1731 = vmatmul.mubr.f32.gmra.mrb[0].mxu0 %v1487
        %v1732 = vpop.f32.mrb[0].mxu0
        %v1733 = vadd.f32 %v1658, %v1732
        %v1734 = vpop.f32.mrb[0].mxu0
        %1735 = vmatprep.mubr.f32.mxu0 0.0
        %1736 = vmatmul.mubr.f32.gmra.mrb[0].mxu0 %v1490
        %v1737 = vpop.f32.mrb[0].mxu0
        %v1738 = vadd.f32 %v1663, %v1737
        %v1739 = vpop.f32.mrb[0].mxu0
        %1740 = vdwg.mxu0
        %v1741 = vld [vmem:[%s11] sm:$0x1]
        %v1743 = vlaneseq
        %v1744 = vshrl.u32 %v1743, 7
        %v1745 = vsub.s32 0, %v1744
        %v1746 = vrot.slane %v1741, %v1745
        %v1748 = vadd.f32 %v1733, %v1746
        %v1749 = vadd.f32 %v1738, %v1746
        %v1750 = vtanh.pop %v1748
        %v1751 = vtanh.pop %v1749
        %v1752 = vmul.f32 %v1585, %v1750
        %v1753 = vmul.f32 %v1587, %v1751
        %v1754 = vsel %vm921, %v1752, 0.0
        %v1755 = vsel %vm921, %v1753, 0.0
        %v1756 = vadd.f32 %v1754, %v1755
        %v1757 = vrot.slane %v1756, 4
        %v1758 = vadd.f32 %v1756, %v1757
        %v1759 = vrot.slane %v1758, 2
        %v1760 = vadd.f32 %v1758, %v1759
        %v1761 = vrot.slane %v1760, 1
        %v1762 = vadd.f32 %v1760, %v1761
        %v1763 = vtanh.pop %v1762
        %vm1764 = vcmask 253952
        %1765 = vst.msk [vmem:[%s420] sm:$0x1] %vm1764, %v1763
        %s1766 = sand.u32 %s296, 1
        %s1767 = scalar_lea.sflag [#allocation3], %s1766
        %s1768 = sand.u32 %s296, 1
        %s1769 = scalar_lea.vmem [#allocation2], %s1768
        // Predicated region
        $region69: #{tpu_custom_call.1} parent=67 // pred_check
          %p1770 = pneg %p306
        $region70: #{tpu_custom_call.1} parent=67 // pred_check_branch
          %1772 = sbr.rel (%p1770) target = $region72
        $region71: #{tpu_custom_call.1} parent=67 // pred_region
          %s1774 = ssub.s32 16, 16
          %1775 = vsyncadd %s1767, %s1774
          %s1776 = smul.addr %s26, 16
          %s1777 = scalar_lea.hbm %s12, %s1776
          %s1779 = sshll.u32 %s1769, 4
          %s1780 = int_to_ptr.vmem [resolvable:$true] %s1779
          %1782 = dma.vmem_to_hbm [thread:$0]  %s1780, 16, %s1777, %s1767
        $region72: #{tpu_custom_call.1} parent=67 // pred_fallthru
          _
      $region68: #{tpu_custom_call.1} parent=5 // pred_fallthru
        _
      %p1783 = scmp.le.s32.totalorder 2, %s21
      // Predicated region
      $region73: #{tpu_custom_call.1} parent=5 // pred_check
        %p1784 = pneg %p1783
      $region74: #{tpu_custom_call.1} parent=5 // pred_check_branch
        %1786 = sbr.rel (%p1784) target = $region76
      $region75: #{tpu_custom_call.1} parent=5 // pred_region
        %s1787 = ssub.s32 %s21, 2
        // Predicated region
        $region77: #{tpu_custom_call.1} parent=75 // pred_check
          %p1788 = pneg %p312
        $region78: #{tpu_custom_call.1} parent=75 // pred_check_branch
          %1790 = sbr.rel (%p1788) target = $region80
        $region79: #{tpu_custom_call.1} parent=75 // pred_region
          %s1791 = sand.u32 %s297, 1
          %s1792 = scalar_lea.sflag [#allocation3], %s1791
          %s1793 = sand.u32 %s297, 1
          %s1794 = scalar_lea.vmem [#allocation2], %s1793
          %1795 = dma.done %s1792, 16
        $region80: #{tpu_custom_call.1} parent=75 // pred_fallthru
          _
      $region76: #{tpu_custom_call.1} parent=5 // pred_fallthru
        _
    $region6: #{tpu_custom_call.1} parent=1 // loop_footer
      %s25 = sadd.s32 1, %s21
    $region7: #{tpu_custom_call.1} parent=1 // loop_footer_branch
      %20 = sbr.rel target = $region3
    $region8: #{tpu_custom_call.1} parent=1 // loop_exit
      _
    %1796 = vsyncpa [#allocation3], 1
    %s1797 = scalar_lea.sflag [#allocation3], 1
    %1798 = vsyncpa %s1797, 1

</llo_original>
